<compile_context>
chip_gen: v7x
topology: tpu7x:2x2x1
jax: 0.10.0
libtpu: 0.0.40
codegen_flags: <defaults>
</compile_context>

<pallas_src>
import jax
import jax.numpy as jnp
from jax.experimental import pallas as pl
from jax.experimental.pallas import tpu as pltpu

H_IN, W_IN = 28, 28
KH, KW = 3, 3
H_OUT, W_OUT = H_IN - KH + 1, W_IN - KW + 1          # 26, 26
P = H_OUT * W_OUT                                     # 676 spatial positions
K_TAPS = KH * KW                                      # 9
C_OUT = 64
FC_IN = P * C_OUT                                     # 43264
FC_OUT = 10


def _round_up(a, b):
    return (a + b - 1) // b * b


# ---------------------------------------------------------------------------
# Kernel 1: conv-as-matmul + bias + sigmoid, TB images per grid step.
# Output is channel-major (N, 64, 676) so that Flatten matches PyTorch.
# ---------------------------------------------------------------------------
def _make_conv_kernel(tb):
    def conv_sigmoid_kernel(p_ref, w_ref, b_ref, o_ref):
        # p_ref: (tb, 9, 676)    im2col patches (tap-major, position-minor)
        # w_ref: (64, 9)         conv weight
        # b_ref: (64, 1)         conv bias (column)
        # o_ref: (tb, 64, 676)   sigmoid(conv) output, channel-major
        w = w_ref[...]
        bias = b_ref[...]
        for i in range(tb):  # static unroll; tb is small
            acc = jnp.dot(w, p_ref[i], preferred_element_type=jnp.float32)
            o_ref[i] = jax.nn.sigmoid(acc + bias)
    return conv_sigmoid_kernel


def conv_sigmoid(patches, w_t, b_col, *, tb):
    n_pad = patches.shape[0]
    assert n_pad % tb == 0
    return pl.pallas_call(
        _make_conv_kernel(tb),
        out_shape=jax.ShapeDtypeStruct((n_pad, C_OUT, P), jnp.float32),
        grid_spec=pltpu.PrefetchScalarGridSpec(
            num_scalar_prefetch=0,
            grid=(n_pad // tb,),
            in_specs=[
                pl.BlockSpec((tb, K_TAPS, P), lambda i: (i, 0, 0)),
                pl.BlockSpec((C_OUT, K_TAPS), lambda i: (0, 0)),
                pl.BlockSpec((C_OUT, 1), lambda i: (0, 0)),
            ],
            out_specs=pl.BlockSpec((tb, C_OUT, P), lambda i: (i, 0, 0)),
        ),
        compiler_params=pltpu.CompilerParams(
            dimension_semantics=("parallel",)),
    )(patches, w_t, b_col)


# ---------------------------------------------------------------------------
# Kernel 2: FC layer.  Weight stays in natural lane-dense (10, 43264) layout,
# fully resident in VMEM; batch is tiled; contraction on the last dims.
# ---------------------------------------------------------------------------
def linear_kernel(x_ref, w_ref, b_ref, o_ref):
    # x_ref: (tb, 43264)  w_ref: (10, 43264)  b_ref: (1, 10)  o_ref: (tb, 10)
    acc = jax.lax.dot_general(
        x_ref[...], w_ref[...],
        dimension_numbers=(((1,), (1,)), ((), ())),   # trans_b matmul
        preferred_element_type=jnp.float32)
    o_ref[...] = acc + b_ref[...]


def linear(x, w, b, *, tb):
    n_pad = x.shape[0]
    assert n_pad % tb == 0
    return pl.pallas_call(
        linear_kernel,
        out_shape=jax.ShapeDtypeStruct((n_pad, FC_OUT), jnp.float32),
        grid_spec=pltpu.PrefetchScalarGridSpec(
            num_scalar_prefetch=0,
            grid=(n_pad // tb,),
            in_specs=[
                pl.BlockSpec((tb, FC_IN), lambda i: (i, 0)),
                pl.BlockSpec((FC_OUT, FC_IN), lambda i: (0, 0)),  # resident
                pl.BlockSpec((1, FC_OUT), lambda i: (0, 0)),
            ],
            out_specs=pl.BlockSpec((tb, FC_OUT), lambda i: (i, 0)),
        ),
        compiler_params=pltpu.CompilerParams(
            dimension_semantics=("parallel",),
            vmem_limit_bytes=32 * 1024 * 1024),
    )(x, w, b)


# ---------------------------------------------------------------------------
# Full model (glue: im2col, padding of the batch to the tile size)
# ---------------------------------------------------------------------------
def my_model_forward(x, params, *, batch_tile=8):
    # x: (N, 1, 28, 28) float32, NCHW like PyTorch
    n = x.shape[0]
    w_conv, b_conv, w_fc, b_fc = params

    tb = min(batch_tile, n)
    n_pad = _round_up(n, tb)

    # im2col, tap-major: patches[n, kh*3+kw, h*26+w] = x[n, 0, h+kh, w+kw]
    patches = jnp.stack(
        [x[:, 0, i:i + H_OUT, j:j + W_OUT].reshape(n, P)
         for i in range(KH) for j in range(KW)],
        axis=1)                                        # (n, 9, 676)
    if n_pad != n:
        patches = jnp.pad(patches, ((0, n_pad - n), (0, 0), (0, 0)))

    w_t = w_conv.reshape(C_OUT, K_TAPS)                # (64, 9)
    b_col = b_conv.reshape(C_OUT, 1)                   # (64, 1)

    act = conv_sigmoid(patches, w_t, b_col, tb=tb)     # (n_pad, 64, 676)

    # Channel-major conv output => PyTorch Flatten is a contiguous reshape
    # (flat index c*676 + p).  FC weight needs NO reordering.
    flat = act.reshape(n_pad, FC_IN)

    out = linear(flat, w_fc, b_fc.reshape(1, FC_OUT), tb=tb)   # (n_pad, 10)
    return out[:n]


def init_params(key):
    k1, k2, k3, k4 = jax.random.split(key, 4)
    # Deterministic synthetic init (uniform, roughly PyTorch-style fan-in scale)
    w_conv = jax.random.uniform(k1, (C_OUT, 1, KH, KW), jnp.float32, -1/3, 1/3)
    b_conv = jax.random.uniform(k2, (C_OUT,), jnp.float32, -1/3, 1/3)
    bound = 1.0 / (FC_IN ** 0.5)
    w_fc = jax.random.uniform(k3, (FC_OUT, FC_IN), jnp.float32, -bound, bound)
    b_fc = jax.random.uniform(k4, (FC_OUT,), jnp.float32, -bound, bound)
    return w_conv, b_conv, w_fc, b_fc


def reference_forward(x, params):
    """Pure-JAX reference matching PyTorch semantics exactly."""
    w_conv, b_conv, w_fc, b_fc = params
    conv = jax.lax.conv_general_dilated(
        x, w_conv, window_strides=(1, 1), padding="VALID",
        dimension_numbers=("NCHW", "OIHW", "NCHW"))
    conv = conv + b_conv[None, :, None, None]
    act = jax.nn.sigmoid(conv)                         # (N, 64, 26, 26)
    flat = act.reshape(act.shape[0], -1)               # channel-major flatten
    return flat @ w_fc.T + b_fc


if __name__ == "__main__":
    key = jax.random.PRNGKey(0)
    x = jax.random.normal(key, (2, 1, H_IN, W_IN), jnp.float32)
    params = init_params(jax.random.PRNGKey(42))

    out = my_model_forward(x, params)
    out = jax.block_until_ready(out)

    ref = reference_forward(x, params)
    assert out.shape == (2, FC_OUT)
    assert jnp.allclose(out, ref, atol=1e-4, rtol=1e-4), (out, ref)

    print("KERNEL_OK")
</pallas_src>

<mosaic_0001>
module attributes {stable_mosaic.version = 11 : i64} {
  func.func @conv_sigmoid_kernel(%arg0: i32, %arg1: memref<2x9x676xf32, #tpu.memory_space<vmem>>, %arg2: memref<64x9xf32, #tpu.memory_space<vmem>>, %arg3: memref<64x1xf32, #tpu.memory_space<vmem>>, %arg4: memref<2x64x676xf32, #tpu.memory_space<vmem>>) attributes {dimension_semantics = [#tpu.dimension_semantics<parallel>], iteration_bounds = array<i64: 1>, scalar_prefetch = 0 : i64, scratch_operands = 0 : i64, tpu.core_type = #tpu.core_type<tc>, window_params = [{transform_indices = @transform_0, window_bounds = array<i64: 2, 9, 676>}, {pipeline_mode = #tpu.pipeline_mode<synchronous>, transform_indices = @transform_1, window_bounds = array<i64: 64, 9>}, {pipeline_mode = #tpu.pipeline_mode<synchronous>, transform_indices = @transform_2, window_bounds = array<i64: 64, 1>}, {transform_indices = @transform_3, window_bounds = array<i64: 2, 64, 676>}]} {
    %c0 = arith.constant 0 : index
    %c0_0 = arith.constant 0 : index
    %0 = vector.load %arg2[%c0, %c0_0] : memref<64x9xf32, #tpu.memory_space<vmem>>, vector<64x9xf32>
    %c0_1 = arith.constant 0 : index
    %c0_2 = arith.constant 0 : index
    %1 = vector.load %arg3[%c0_1, %c0_2] : memref<64x1xf32, #tpu.memory_space<vmem>>, vector<64x1xf32>
    %c0_3 = arith.constant 0 : index
    %c0_4 = arith.constant 0 : index
    %c0_5 = arith.constant 0 : index
    %2 = vector.load %arg1[%c0_3, %c0_4, %c0_5] : memref<2x9x676xf32, #tpu.memory_space<vmem>>, vector<1x9x676xf32>
    %3 = vector.shape_cast %2 : vector<1x9x676xf32> to vector<9x676xf32>
    %cst = arith.constant dense<0.000000e+00> : vector<64x676xf32>
    %4 = tpu.matmul %0, %3, %cst {dimension_numbers = #tpu.dot_dimension_numbers<[1], [0], [0], [1], [0, 0, 1, 1], [], []>} : vector<64x9xf32>, vector<9x676xf32>, vector<64x676xf32> -> vector<64x676xf32>
    %5 = vector.broadcast %1 : vector<64x1xf32> to vector<64x676xf32>
    %6 = arith.addf %4, %5 : vector<64x676xf32>
    %7 = arith.negf %6 : vector<64x676xf32>
    %8 = math.exp %7 : vector<64x676xf32>
    %cst_6 = arith.constant 1.000000e+00 : f32
    %9 = vector.broadcast %cst_6 : f32 to vector<64x676xf32>
    %10 = arith.addf %9, %8 : vector<64x676xf32>
    %11 = arith.divf %9, %10 : vector<64x676xf32>
    %c0_7 = arith.constant 0 : index
    %c0_8 = arith.constant 0 : index
    %c0_9 = arith.constant 0 : index
    %12 = vector.load %arg4[%c0_7, %c0_8, %c0_9] : memref<2x64x676xf32, #tpu.memory_space<vmem>>, vector<1x64x676xf32>
    %13 = vector.shape_cast %12 : vector<1x64x676xf32> to vector<64x676xf32>
    %14 = vector.shape_cast %11 : vector<64x676xf32> to vector<1x64x676xf32>
    tpu.vector_store %arg4[%c0_7, %c0_8, %c0_9], %14 {strides = array<i32>} : memref<2x64x676xf32, #tpu.memory_space<vmem>>, vector<1x64x676xf32>,
    %c1 = arith.constant 1 : index
    %c0_10 = arith.constant 0 : index
    %c0_11 = arith.constant 0 : index
    %15 = vector.load %arg1[%c1, %c0_10, %c0_11] : memref<2x9x676xf32, #tpu.memory_space<vmem>>, vector<1x9x676xf32>
    %16 = vector.shape_cast %15 : vector<1x9x676xf32> to vector<9x676xf32>
    %cst_12 = arith.constant dense<0.000000e+00> : vector<64x676xf32>
    %17 = tpu.matmul %0, %16, %cst_12 {dimension_numbers = #tpu.dot_dimension_numbers<[1], [0], [0], [1], [0, 0, 1, 1], [], []>} : vector<64x9xf32>, vector<9x676xf32>, vector<64x676xf32> -> vector<64x676xf32>
    %18 = vector.broadcast %1 : vector<64x1xf32> to vector<64x676xf32>
    %19 = arith.addf %17, %18 : vector<64x676xf32>
    %20 = arith.negf %19 : vector<64x676xf32>
    %21 = math.exp %20 : vector<64x676xf32>
    %cst_13 = arith.constant 1.000000e+00 : f32
    %22 = vector.broadcast %cst_13 : f32 to vector<64x676xf32>
    %23 = arith.addf %22, %21 : vector<64x676xf32>
    %24 = arith.divf %22, %23 : vector<64x676xf32>
    %c1_14 = arith.constant 1 : index
    %c0_15 = arith.constant 0 : index
    %c0_16 = arith.constant 0 : index
    %25 = vector.load %arg4[%c1_14, %c0_15, %c0_16] : memref<2x64x676xf32, #tpu.memory_space<vmem>>, vector<1x64x676xf32>
    %26 = vector.shape_cast %25 : vector<1x64x676xf32> to vector<64x676xf32>
    %27 = vector.shape_cast %24 : vector<64x676xf32> to vector<1x64x676xf32>
    tpu.vector_store %arg4[%c1_14, %c0_15, %c0_16], %27 {strides = array<i32>} : memref<2x64x676xf32, #tpu.memory_space<vmem>>, vector<1x64x676xf32>,
    return
  }
  func.func @transform_0(%arg0: i32) -> (i32, i32, i32) {
    %c0_i32 = arith.constant 0 : i32
    %c0_i32_0 = arith.constant 0 : i32
    %c0_i32_1 = arith.constant 0 : i32
    return %arg0, %c0_i32, %c0_i32_0 : i32, i32, i32
  }
  func.func @transform_1(%arg0: i32) -> (i32, i32) {
    %c0_i32 = arith.constant 0 : i32
    %c0_i32_0 = arith.constant 0 : i32
    %c0_i32_1 = arith.constant 0 : i32
    return %c0_i32, %c0_i32_0 : i32, i32
  }
  func.func @transform_2(%arg0: i32) -> (i32, i32) {
    %c0_i32 = arith.constant 0 : i32
    %c0_i32_0 = arith.constant 0 : i32
    %c0_i32_1 = arith.constant 0 : i32
    return %c0_i32, %c0_i32_0 : i32, i32
  }
  func.func @transform_3(%arg0: i32) -> (i32, i32, i32) {
    %c0_i32 = arith.constant 0 : i32
    %c0_i32_0 = arith.constant 0 : i32
    %c0_i32_1 = arith.constant 0 : i32
    return %arg0, %c0_i32, %c0_i32_0 : i32, i32, i32
  }
}

</mosaic_0001>

<llo_original>
// kernel: tpu_custom_call.1
$region0: #{tpu_custom_call.1}
  #allocation0 [shape = 'u32[]', space=smem, size = 0x4, offset = 0x4, fixed_abs, tag = 'smem constant byte address 0x4 - core index']
  #allocation1 [shape = 'u32[144,128]{1,0:T(1,128)}', space=vmem, size = 0x12000, scoped, tag = 'internal scratch']
  %s0 = inlined_call_operand.vmem [shape: f32[2,9,676], index: 0, kind: input, shape index: {}]
  %s1 = inlined_call_operand.vmem [shape: f32[64,9], index: 1, kind: input, shape index: {}]
  %s2 = inlined_call_operand.vmem [shape: f32[64,1], index: 2, kind: input, shape index: {}]
  %s3 = inlined_call_operand.hbm [shape: f32[2,64,676], index: 3, kind: output, shape index: {}]
  %s4 = sld [smem:[#allocation0]]
  $region22: #{tpu_custom_call.1} parent=0
    _
  %s6 = ssub.s32 1, %s4
  %s7 = scalar_select 0, %s6, %s4
  $region1: #{tpu_custom_call.1} parent=0
    #allocation2 [shape = 'u8[393216]{0}', space=vmem, size = 0x60000, scoped, tag = 'output window, operand 0, single buffered']
    #allocation3 [shape = 's32[1]{0}', space=sflag, size = 0x4, scoped, tag = 'scoped memory for tpu_custom_call.1']
    %8 = vsyncpa [#allocation3], 0
    // Predicated region
    $region2: #{tpu_custom_call.1} parent=1 // pred_check
      _
    $region3: #{tpu_custom_call.1} parent=1 // pred_check_branch
      %10 = sbr.rel (0) target = $region5
    $region4: #{tpu_custom_call.1} parent=1 // pred_region
      _
    $region5: #{tpu_custom_call.1} parent=1 // pred_fallthru
      _
    // Predicated region
    $region6: #{tpu_custom_call.1} parent=1 // pred_check
      _
    $region7: #{tpu_custom_call.1} parent=1 // pred_check_branch
      %12 = sbr.rel (0) target = $region9
    $region8: #{tpu_custom_call.1} parent=1 // pred_region
      _
    $region9: #{tpu_custom_call.1} parent=1 // pred_fallthru
      _
    // Predicated region
    $region10: #{tpu_custom_call.1} parent=1 // pred_check
      _
    $region11: #{tpu_custom_call.1} parent=1 // pred_check_branch
      %14 = sbr.rel (0) target = $region13
    $region12: #{tpu_custom_call.1} parent=1 // pred_region
      _
    $region13: #{tpu_custom_call.1} parent=1 // pred_fallthru
      _
    %v15 = vld [vmem:[%s1] sm:$0xff]
    %v16 = vld [vmem:[%s1 + $0x8] sm:$0xff]
    %v17 = vld [vmem:[%s1 + $0x10] sm:$0xff]
    %v18 = vld [vmem:[%s1 + $0x18] sm:$0xff]
    %v19 = vld [vmem:[%s1 + $0x20] sm:$0xff]
    %v20 = vld [vmem:[%s1 + $0x28] sm:$0xff]
    %v21 = vld [vmem:[%s1 + $0x30] sm:$0xff]
    %v22 = vld [vmem:[%s1 + $0x38] sm:$0xff]
    %v23 = vld [vmem:[%s2] sm:$0xff]
    %v24 = vld [vmem:[%s2 + $0x8] sm:$0xff]
    %v25 = vld [vmem:[%s2 + $0x10] sm:$0xff]
    %v26 = vld [vmem:[%s2 + $0x18] sm:$0xff]
    %v27 = vld [vmem:[%s2 + $0x20] sm:$0xff]
    %v28 = vld [vmem:[%s2 + $0x28] sm:$0xff]
    %v29 = vld [vmem:[%s2 + $0x30] sm:$0xff]
    %v30 = vld [vmem:[%s2 + $0x38] sm:$0xff]
    %v31 = vld [vmem:[%s0] sm:$0xff]
    %v32 = vld [vmem:[%s0 + $0x8] sm:$0xff]
    %v33 = vld [vmem:[%s0 + $0x10] sm:$0xff]
    %v34 = vld [vmem:[%s0 + $0x18] sm:$0xff]
    %v35 = vld [vmem:[%s0 + $0x20] sm:$0xff]
    %v36 = vld [vmem:[%s0 + $0x28] sm:$0xff]
    %v37 = vld [vmem:[%s0 + $0x30] sm:$0x1]
    %v38 = vld [vmem:[%s0 + $0x38] sm:$0x1]
    %v39 = vld [vmem:[%s0 + $0x40] sm:$0x1]
    %v40 = vld [vmem:[%s0 + $0x48] sm:$0x1]
    %v41 = vld [vmem:[%s0 + $0x50] sm:$0x1]
    %v42 = vld [vmem:[%s0 + $0x58] sm:$0x1]
    %44 = vset.pattern.permute.xlu0 0
    %45 = vperm.xlu0 %44, %v23
    %v46 = vpop.permute.xlu0 %45
    %49 = vset.pattern.permute.xlu0 0
    %50 = vperm.xlu0 %49, %v24
    %v51 = vpop.permute.xlu0 %50
    %54 = vset.pattern.permute.xlu0 0
    %55 = vperm.xlu0 %54, %v25
    %v56 = vpop.permute.xlu0 %55
    %59 = vset.pattern.permute.xlu0 0
    %60 = vperm.xlu0 %59, %v26
    %v61 = vpop.permute.xlu0 %60
    %64 = vset.pattern.permute.xlu0 0
    %65 = vperm.xlu0 %64, %v27
    %v66 = vpop.permute.xlu0 %65
    %69 = vset.pattern.permute.xlu0 0
    %70 = vperm.xlu0 %69, %v28
    %v71 = vpop.permute.xlu0 %70
    %74 = vset.pattern.permute.xlu0 0
    %75 = vperm.xlu0 %74, %v29
    %v76 = vpop.permute.xlu0 %75
    %79 = vset.pattern.permute.xlu0 0
    %80 = vperm.xlu0 %79, %v30
    %v81 = vpop.permute.xlu0 %80
    %vm83 = vcmask 72704
    %v85 = vsel %vm83, %v15, 0
    %v88 = vsel %vm83, %v16, 0
    %v91 = vsel %vm83, %v17, 0
    %v94 = vsel %vm83, %v18, 0
    %v97 = vsel %vm83, %v19, 0
    %v100 = vsel %vm83, %v20, 0
    %v103 = vsel %vm83, %v21, 0
    %v106 = vsel %vm83, %v22, 0
    %vm108 = vcmask 1040384
    %v110 = vsel %vm108, %v37, 0
    %v113 = vsel %vm108, %v38, 0
    %v116 = vsel %vm108, %v39, 0
    %v119 = vsel %vm108, %v40, 0
    %v122 = vsel %vm108, %v41, 0
    %v125 = vsel %vm108, %v42, 0
    %127 = vmatprep.subr.mxu0 %v32
    %128 = vmatpush1.msra.mxu0 %v31
    %129 = vmatprep.subr.mxu0 %v113
    %130 = vmatpush1.msra.mxu0 %v110
    %131 = vmatprep.subr.mxu0 0.0
    %132 = vmatpush1.msra.mxu0 0.0
    %133 = vmatprep.subr.mxu0 0.0
    %134 = vmatpush1.msra.mxu0 0.0
    %135 = vmatprep.subr.mxu0 0.0
    %136 = vmatpush1.msra.mxu0 0.0
    %137 = vmatprep.subr.mxu0 0.0
    %138 = vmatpush1.msra.mxu0 0.0
    %139 = vmatprep.subr.mxu0 0.0
    %140 = vmatpush1.msra.mxu0 0.0
    %141 = vmatprep.subr.mxu0 0.0
    %142 = vmatpush1.msra.mxu0 0.0
    %143 = vmatprep.subr.mxu0 0.0
    %144 = vmatpush1.msra.mxu0 0.0
    %145 = vmatprep.subr.mxu0 0.0
    %146 = vmatpush1.msra.mxu0 0.0
    %147 = vmatprep.subr.mxu0 0.0
    %148 = vmatpush1.msra.mxu0 0.0
    %149 = vmatprep.subr.mxu0 0.0
    %150 = vmatpush1.msra.mxu0 0.0
    %151 = vmatprep.subr.mxu0 0.0
    %152 = vmatpush1.msra.mxu0 0.0
    %153 = vmatprep.subr.mxu0 0.0
    %154 = vmatpush1.msra.mxu0 0.0
    %155 = vmatprep.subr.mxu0 0.0
    %156 = vmatpush1.msra.mxu0 0.0
    %157 = vmatprep.subr.mxu0 0.0
    %158 = vmatpush1.msra.mxu0 0.0
    %159 = vmatprep.subr.mxu0 0.0
    %160 = vmatpush1.msra.mxu0 0.0
    %161 = vmatprep.subr.mxu0 0.0
    %162 = vmatpush1.msra.mxu0 0.0
    %163 = vmatprep.subr.mxu0 0.0
    %164 = vmatpush1.msra.mxu0 0.0
    %165 = vmatprep.subr.mxu0 0.0
    %166 = vmatpush1.msra.mxu0 0.0
    %167 = vmatprep.subr.mxu0 0.0
    %168 = vmatpush1.msra.mxu0 0.0
    %169 = vmatprep.subr.mxu0 0.0
    %170 = vmatpush1.msra.mxu0 0.0
    %171 = vmatprep.subr.mxu0 0.0
    %172 = vmatpush1.msra.mxu0 0.0
    %173 = vmatprep.subr.mxu0 0.0
    %174 = vmatpush1.msra.mxu0 0.0
    %175 = vmatprep.subr.mxu0 0.0
    %176 = vmatpush1.msra.mxu0 0.0
    %177 = vmatprep.subr.mxu0 0.0
    %178 = vmatpush1.msra.mxu0 0.0
    %179 = vmatprep.subr.mxu0 0.0
    %180 = vmatpush1.msra.mxu0 0.0
    %181 = vmatprep.subr.mxu0 0.0
    %182 = vmatpush1.msra.mxu0 0.0
    %183 = vmatprep.subr.mxu0 0.0
    %184 = vmatpush1.msra.mxu0 0.0
    %185 = vmatprep.subr.mxu0 0.0
    %186 = vmatpush1.msra.mxu0 0.0
    %187 = vmatprep.subr.mxu0 0.0
    %188 = vmatpush1.msra.mxu0 0.0
    %189 = vmatprep.subr.mxu0 0.0
    %190 = vmatpush1.msra.mxu0 0.0
    %191 = vmatprep.mubr.f32.mxu0 0.0
    %192 = vmatmul.mubr.f32.gmra.mrb[0].mxu0 %v85
    %v193 = vpop.f32.mrb[0].mxu0
    %v194 = vadd.f32 %v46, %v193
    %v195 = vpop.f32.mrb[0].mxu0
    %v196 = vadd.f32 %v46, %v195
    %197 = vmatprep.mubr.f32.mxu0 0.0
    %198 = vmatmul.mubr.f32.gmra.mrb[0].mxu0 %v88
    %v199 = vpop.f32.mrb[0].mxu0
    %v200 = vadd.f32 %v51, %v199
    %v201 = vpop.f32.mrb[0].mxu0
    %v202 = vadd.f32 %v51, %v201
    %203 = vmatprep.mubr.f32.mxu0 0.0
    %204 = vmatmul.mubr.f32.gmra.mrb[0].mxu0 %v91
    %v205 = vpop.f32.mrb[0].mxu0
    %v206 = vadd.f32 %v56, %v205
    %v207 = vpop.f32.mrb[0].mxu0
    %v208 = vadd.f32 %v56, %v207
    %209 = vmatprep.mubr.f32.mxu0 0.0
    %210 = vmatmul.mubr.f32.gmra.mrb[0].mxu0 %v94
    %v211 = vpop.f32.mrb[0].mxu0
    %v212 = vadd.f32 %v61, %v211
    %v213 = vpop.f32.mrb[0].mxu0
    %v214 = vadd.f32 %v61, %v213
    %215 = vmatprep.mubr.f32.mxu0 0.0
    %216 = vmatmul.mubr.f32.gmra.mrb[0].mxu0 %v97
    %v217 = vpop.f32.mrb[0].mxu0
    %v218 = vadd.f32 %v66, %v217
    %v219 = vpop.f32.mrb[0].mxu0
    %v220 = vadd.f32 %v66, %v219
    %221 = vmatprep.mubr.f32.mxu0 0.0
    %222 = vmatmul.mubr.f32.gmra.mrb[0].mxu0 %v100
    %v223 = vpop.f32.mrb[0].mxu0
    %v224 = vadd.f32 %v71, %v223
    %v225 = vpop.f32.mrb[0].mxu0
    %v226 = vadd.f32 %v71, %v225
    %227 = vmatprep.mubr.f32.mxu0 0.0
    %228 = vmatmul.mubr.f32.gmra.mrb[0].mxu0 %v103
    %v229 = vpop.f32.mrb[0].mxu0
    %v230 = vadd.f32 %v76, %v229
    %v231 = vpop.f32.mrb[0].mxu0
    %v232 = vadd.f32 %v76, %v231
    %233 = vmatprep.mubr.f32.mxu0 0.0
    %234 = vmatmul.mubr.f32.gmra.mrb[0].mxu0 %v106
    %v235 = vpop.f32.mrb[0].mxu0
    %v236 = vadd.f32 %v81, %v235
    %v237 = vpop.f32.mrb[0].mxu0
    %v238 = vadd.f32 %v81, %v237
    %239 = vdwg.mxu0
    %240 = vmatprep.subr.mxu0 %v34
    %241 = vmatpush1.msra.mxu0 %v33
    %242 = vmatprep.subr.mxu0 %v119
    %243 = vmatpush1.msra.mxu0 %v116
    %244 = vmatprep.subr.mxu0 0.0
    %245 = vmatpush1.msra.mxu0 0.0
    %246 = vmatprep.subr.mxu0 0.0
    %247 = vmatpush1.msra.mxu0 0.0
    %248 = vmatprep.subr.mxu0 0.0
    %249 = vmatpush1.msra.mxu0 0.0
    %250 = vmatprep.subr.mxu0 0.0
    %251 = vmatpush1.msra.mxu0 0.0
    %252 = vmatprep.subr.mxu0 0.0
    %253 = vmatpush1.msra.mxu0 0.0
    %254 = vmatprep.subr.mxu0 0.0
    %255 = vmatpush1.msra.mxu0 0.0
    %256 = vmatprep.subr.mxu0 0.0
    %257 = vmatpush1.msra.mxu0 0.0
    %258 = vmatprep.subr.mxu0 0.0
    %259 = vmatpush1.msra.mxu0 0.0
    %260 = vmatprep.subr.mxu0 0.0
    %261 = vmatpush1.msra.mxu0 0.0
    %262 = vmatprep.subr.mxu0 0.0
    %263 = vmatpush1.msra.mxu0 0.0
    %264 = vmatprep.subr.mxu0 0.0
    %265 = vmatpush1.msra.mxu0 0.0
    %266 = vmatprep.subr.mxu0 0.0
    %267 = vmatpush1.msra.mxu0 0.0
    %268 = vmatprep.subr.mxu0 0.0
    %269 = vmatpush1.msra.mxu0 0.0
    %270 = vmatprep.subr.mxu0 0.0
    %271 = vmatpush1.msra.mxu0 0.0
    %272 = vmatprep.subr.mxu0 0.0
    %273 = vmatpush1.msra.mxu0 0.0
    %274 = vmatprep.subr.mxu0 0.0
    %275 = vmatpush1.msra.mxu0 0.0
    %276 = vmatprep.subr.mxu0 0.0
    %277 = vmatpush1.msra.mxu0 0.0
    %278 = vmatprep.subr.mxu0 0.0
    %279 = vmatpush1.msra.mxu0 0.0
    %280 = vmatprep.subr.mxu0 0.0
    %281 = vmatpush1.msra.mxu0 0.0
    %282 = vmatprep.subr.mxu0 0.0
    %283 = vmatpush1.msra.mxu0 0.0
    %284 = vmatprep.subr.mxu0 0.0
    %285 = vmatpush1.msra.mxu0 0.0
    %286 = vmatprep.subr.mxu0 0.0
    %287 = vmatpush1.msra.mxu0 0.0
    %288 = vmatprep.subr.mxu0 0.0
    %289 = vmatpush1.msra.mxu0 0.0
    %290 = vmatprep.subr.mxu0 0.0
    %291 = vmatpush1.msra.mxu0 0.0
    %292 = vmatprep.subr.mxu0 0.0
    %293 = vmatpush1.msra.mxu0 0.0
    %294 = vmatprep.subr.mxu0 0.0
    %295 = vmatpush1.msra.mxu0 0.0
    %296 = vmatprep.subr.mxu0 0.0
    %297 = vmatpush1.msra.mxu0 0.0
    %298 = vmatprep.subr.mxu0 0.0
    %299 = vmatpush1.msra.mxu0 0.0
    %300 = vmatprep.subr.mxu0 0.0
    %301 = vmatpush1.msra.mxu0 0.0
    %302 = vmatprep.subr.mxu0 0.0
    %303 = vmatpush1.msra.mxu0 0.0
    %304 = vmatprep.mubr.f32.mxu0 0.0
    %305 = vmatmul.mubr.f32.gmra.mrb[0].mxu0 %v85
    %v306 = vpop.f32.mrb[0].mxu0
    %v307 = vadd.f32 %v46, %v306
    %v308 = vpop.f32.mrb[0].mxu0
    %v309 = vadd.f32 %v46, %v308
    %310 = vmatprep.mubr.f32.mxu0 0.0
    %311 = vmatmul.mubr.f32.gmra.mrb[0].mxu0 %v88
    %v312 = vpop.f32.mrb[0].mxu0
    %v313 = vadd.f32 %v51, %v312
    %v314 = vpop.f32.mrb[0].mxu0
    %v315 = vadd.f32 %v51, %v314
    %316 = vmatprep.mubr.f32.mxu0 0.0
    %317 = vmatmul.mubr.f32.gmra.mrb[0].mxu0 %v91
    %v318 = vpop.f32.mrb[0].mxu0
    %v319 = vadd.f32 %v56, %v318
    %v320 = vpop.f32.mrb[0].mxu0
    %v321 = vadd.f32 %v56, %v320
    %322 = vmatprep.mubr.f32.mxu0 0.0
    %323 = vmatmul.mubr.f32.gmra.mrb[0].mxu0 %v94
    %v324 = vpop.f32.mrb[0].mxu0
    %v325 = vadd.f32 %v61, %v324
    %v326 = vpop.f32.mrb[0].mxu0
    %v327 = vadd.f32 %v61, %v326
    %328 = vmatprep.mubr.f32.mxu0 0.0
    %329 = vmatmul.mubr.f32.gmra.mrb[0].mxu0 %v97
    %v330 = vpop.f32.mrb[0].mxu0
    %v331 = vadd.f32 %v66, %v330
    %v332 = vpop.f32.mrb[0].mxu0
    %v333 = vadd.f32 %v66, %v332
    %334 = vmatprep.mubr.f32.mxu0 0.0
    %335 = vmatmul.mubr.f32.gmra.mrb[0].mxu0 %v100
    %v336 = vpop.f32.mrb[0].mxu0
    %v337 = vadd.f32 %v71, %v336
    %v338 = vpop.f32.mrb[0].mxu0
    %v339 = vadd.f32 %v71, %v338
    %340 = vmatprep.mubr.f32.mxu0 0.0
    %341 = vmatmul.mubr.f32.gmra.mrb[0].mxu0 %v103
    %v342 = vpop.f32.mrb[0].mxu0
    %v343 = vadd.f32 %v76, %v342
    %v344 = vpop.f32.mrb[0].mxu0
    %v345 = vadd.f32 %v76, %v344
    %346 = vmatprep.mubr.f32.mxu0 0.0
    %347 = vmatmul.mubr.f32.gmra.mrb[0].mxu0 %v106
    %v348 = vpop.f32.mrb[0].mxu0
    %v349 = vadd.f32 %v81, %v348
    %v350 = vpop.f32.mrb[0].mxu0
    %v351 = vadd.f32 %v81, %v350
    %352 = vdwg.mxu0
    %353 = vmatprep.subr.mxu0 %v36
    %354 = vmatpush1.msra.mxu0 %v35
    %355 = vmatprep.subr.mxu0 %v125
    %356 = vmatpush1.msra.mxu0 %v122
    %357 = vmatprep.subr.mxu0 0.0
    %358 = vmatpush1.msra.mxu0 0.0
    %359 = vmatprep.subr.mxu0 0.0
    %360 = vmatpush1.msra.mxu0 0.0
    %361 = vmatprep.subr.mxu0 0.0
    %362 = vmatpush1.msra.mxu0 0.0
    %363 = vmatprep.subr.mxu0 0.0
    %364 = vmatpush1.msra.mxu0 0.0
    %365 = vmatprep.subr.mxu0 0.0
    %366 = vmatpush1.msra.mxu0 0.0
    %367 = vmatprep.subr.mxu0 0.0
    %368 = vmatpush1.msra.mxu0 0.0
    %369 = vmatprep.subr.mxu0 0.0
    %370 = vmatpush1.msra.mxu0 0.0
    %371 = vmatprep.subr.mxu0 0.0
    %372 = vmatpush1.msra.mxu0 0.0
    %373 = vmatprep.subr.mxu0 0.0
    %374 = vmatpush1.msra.mxu0 0.0
    %375 = vmatprep.subr.mxu0 0.0
    %376 = vmatpush1.msra.mxu0 0.0
    %377 = vmatprep.subr.mxu0 0.0
    %378 = vmatpush1.msra.mxu0 0.0
    %379 = vmatprep.subr.mxu0 0.0
    %380 = vmatpush1.msra.mxu0 0.0
    %381 = vmatprep.subr.mxu0 0.0
    %382 = vmatpush1.msra.mxu0 0.0
    %383 = vmatprep.subr.mxu0 0.0
    %384 = vmatpush1.msra.mxu0 0.0
    %385 = vmatprep.subr.mxu0 0.0
    %386 = vmatpush1.msra.mxu0 0.0
    %387 = vmatprep.subr.mxu0 0.0
    %388 = vmatpush1.msra.mxu0 0.0
    %389 = vmatprep.subr.mxu0 0.0
    %390 = vmatpush1.msra.mxu0 0.0
    %391 = vmatprep.subr.mxu0 0.0
    %392 = vmatpush1.msra.mxu0 0.0
    %393 = vmatprep.subr.mxu0 0.0
    %394 = vmatpush1.msra.mxu0 0.0
    %395 = vmatprep.subr.mxu0 0.0
    %396 = vmatpush1.msra.mxu0 0.0
    %397 = vmatprep.subr.mxu0 0.0
    %398 = vmatpush1.msra.mxu0 0.0
    %399 = vmatprep.subr.mxu0 0.0
    %400 = vmatpush1.msra.mxu0 0.0
    %401 = vmatprep.subr.mxu0 0.0
    %402 = vmatpush1.msra.mxu0 0.0
    %403 = vmatprep.subr.mxu0 0.0
    %404 = vmatpush1.msra.mxu0 0.0
    %405 = vmatprep.subr.mxu0 0.0
    %406 = vmatpush1.msra.mxu0 0.0
    %407 = vmatprep.subr.mxu0 0.0
    %408 = vmatpush1.msra.mxu0 0.0
    %409 = vmatprep.subr.mxu0 0.0
    %410 = vmatpush1.msra.mxu0 0.0
    %411 = vmatprep.subr.mxu0 0.0
    %412 = vmatpush1.msra.mxu0 0.0
    %413 = vmatprep.subr.mxu0 0.0
    %414 = vmatpush1.msra.mxu0 0.0
    %415 = vmatprep.subr.mxu0 0.0
    %416 = vmatpush1.msra.mxu0 0.0
    %417 = vmatprep.mubr.f32.mxu0 0.0
    %418 = vmatmul.mubr.f32.gmra.mrb[0].mxu0 %v85
    %v419 = vpop.f32.mrb[0].mxu0
    %v420 = vadd.f32 %v46, %v419
    %v421 = vpop.f32.mrb[0].mxu0
    %v422 = vadd.f32 %v46, %v421
    %423 = vmatprep.mubr.f32.mxu0 0.0
    %424 = vmatmul.mubr.f32.gmra.mrb[0].mxu0 %v88
    %v425 = vpop.f32.mrb[0].mxu0
    %v426 = vadd.f32 %v51, %v425
    %v427 = vpop.f32.mrb[0].mxu0
    %v428 = vadd.f32 %v51, %v427
    %429 = vmatprep.mubr.f32.mxu0 0.0
    %430 = vmatmul.mubr.f32.gmra.mrb[0].mxu0 %v91
    %v431 = vpop.f32.mrb[0].mxu0
    %v432 = vadd.f32 %v56, %v431
    %v433 = vpop.f32.mrb[0].mxu0
    %v434 = vadd.f32 %v56, %v433
    %435 = vmatprep.mubr.f32.mxu0 0.0
    %436 = vmatmul.mubr.f32.gmra.mrb[0].mxu0 %v94
    %v437 = vpop.f32.mrb[0].mxu0
    %v438 = vadd.f32 %v61, %v437
    %v439 = vpop.f32.mrb[0].mxu0
    %v440 = vadd.f32 %v61, %v439
    %441 = vmatprep.mubr.f32.mxu0 0.0
    %442 = vmatmul.mubr.f32.gmra.mrb[0].mxu0 %v97
    %v443 = vpop.f32.mrb[0].mxu0
    %v444 = vadd.f32 %v66, %v443
    %v445 = vpop.f32.mrb[0].mxu0
    %v446 = vadd.f32 %v66, %v445
    %447 = vmatprep.mubr.f32.mxu0 0.0
    %448 = vmatmul.mubr.f32.gmra.mrb[0].mxu0 %v100
    %v449 = vpop.f32.mrb[0].mxu0
    %v450 = vadd.f32 %v71, %v449
    %v451 = vpop.f32.mrb[0].mxu0
    %v452 = vadd.f32 %v71, %v451
    %453 = vmatprep.mubr.f32.mxu0 0.0
    %454 = vmatmul.mubr.f32.gmra.mrb[0].mxu0 %v103
    %v455 = vpop.f32.mrb[0].mxu0
    %v456 = vadd.f32 %v76, %v455
    %v457 = vpop.f32.mrb[0].mxu0
    %v458 = vadd.f32 %v76, %v457
    %459 = vmatprep.mubr.f32.mxu0 0.0
    %460 = vmatmul.mubr.f32.gmra.mrb[0].mxu0 %v106
    %v461 = vpop.f32.mrb[0].mxu0
    %v462 = vadd.f32 %v81, %v461
    %v463 = vpop.f32.mrb[0].mxu0
    %v464 = vadd.f32 %v81, %v463
    %465 = vdwg.mxu0
    %v466 = vxor.u32 %v194, 2147483648
    %v467 = vxor.u32 %v196, 2147483648
    %v468 = vxor.u32 %v307, 2147483648
    %v469 = vxor.u32 %v309, 2147483648
    %v470 = vxor.u32 %v420, 2147483648
    %v471 = vxor.u32 %v422, 2147483648
    %v472 = vxor.u32 %v200, 2147483648
    %v473 = vxor.u32 %v202, 2147483648
    %v474 = vxor.u32 %v313, 2147483648
    %v475 = vxor.u32 %v315, 2147483648
    %v476 = vxor.u32 %v426, 2147483648
    %v477 = vxor.u32 %v428, 2147483648
    %v478 = vxor.u32 %v206, 2147483648
    %v479 = vxor.u32 %v208, 2147483648
    %v480 = vxor.u32 %v319, 2147483648
    %v481 = vxor.u32 %v321, 2147483648
    %v482 = vxor.u32 %v432, 2147483648
    %v483 = vxor.u32 %v434, 2147483648
    %v484 = vxor.u32 %v212, 2147483648
    %v485 = vxor.u32 %v214, 2147483648
    %v486 = vxor.u32 %v325, 2147483648
    %v487 = vxor.u32 %v327, 2147483648
    %v488 = vxor.u32 %v438, 2147483648
    %v489 = vxor.u32 %v440, 2147483648
    %v490 = vxor.u32 %v218, 2147483648
    %v491 = vxor.u32 %v220, 2147483648
    %v492 = vxor.u32 %v331, 2147483648
    %v493 = vxor.u32 %v333, 2147483648
    %v494 = vxor.u32 %v444, 2147483648
    %v495 = vxor.u32 %v446, 2147483648
    %v496 = vxor.u32 %v224, 2147483648
    %v497 = vxor.u32 %v226, 2147483648
    %v498 = vxor.u32 %v337, 2147483648
    %v499 = vxor.u32 %v339, 2147483648
    %v500 = vxor.u32 %v450, 2147483648
    %v501 = vxor.u32 %v452, 2147483648
    %v502 = vxor.u32 %v230, 2147483648
    %v503 = vxor.u32 %v232, 2147483648
    %v504 = vxor.u32 %v343, 2147483648
    %v505 = vxor.u32 %v345, 2147483648
    %v506 = vxor.u32 %v456, 2147483648
    %v507 = vxor.u32 %v458, 2147483648
    %v508 = vxor.u32 %v236, 2147483648
    %v509 = vxor.u32 %v238, 2147483648
    %v510 = vxor.u32 %v349, 2147483648
    %v511 = vxor.u32 %v351, 2147483648
    %v512 = vxor.u32 %v462, 2147483648
    %v513 = vxor.u32 %v464, 2147483648
    %v514 = vmul.f32 %v466, 1.442695
    %v515 = vpow.pop %v514
    %v516 = vmul.f32 %v467, 1.442695
    %v517 = vpow.pop %v516
    %v518 = vmul.f32 %v468, 1.442695
    %v519 = vpow.pop %v518
    %v520 = vmul.f32 %v469, 1.442695
    %v521 = vpow.pop %v520
    %v522 = vmul.f32 %v470, 1.442695
    %v523 = vpow.pop %v522
    %v524 = vmul.f32 %v471, 1.442695
    %v525 = vpow.pop %v524
    %v526 = vmul.f32 %v472, 1.442695
    %v527 = vpow.pop %v526
    %v528 = vmul.f32 %v473, 1.442695
    %v529 = vpow.pop %v528
    %v530 = vmul.f32 %v474, 1.442695
    %v531 = vpow.pop %v530
    %v532 = vmul.f32 %v475, 1.442695
    %v533 = vpow.pop %v532
    %v534 = vmul.f32 %v476, 1.442695
    %v535 = vpow.pop %v534
    %v536 = vmul.f32 %v477, 1.442695
    %v537 = vpow.pop %v536
    %v538 = vmul.f32 %v478, 1.442695
    %v539 = vpow.pop %v538
    %v540 = vmul.f32 %v479, 1.442695
    %v541 = vpow.pop %v540
    %v542 = vmul.f32 %v480, 1.442695
    %v543 = vpow.pop %v542
    %v544 = vmul.f32 %v481, 1.442695
    %v545 = vpow.pop %v544
    %v546 = vmul.f32 %v482, 1.442695
    %v547 = vpow.pop %v546
    %v548 = vmul.f32 %v483, 1.442695
    %v549 = vpow.pop %v548
    %v550 = vmul.f32 %v484, 1.442695
    %v551 = vpow.pop %v550
    %v552 = vmul.f32 %v485, 1.442695
    %v553 = vpow.pop %v552
    %v554 = vmul.f32 %v486, 1.442695
    %v555 = vpow.pop %v554
    %v556 = vmul.f32 %v487, 1.442695
    %v557 = vpow.pop %v556
    %v558 = vmul.f32 %v488, 1.442695
    %v559 = vpow.pop %v558
    %v560 = vmul.f32 %v489, 1.442695
    %v561 = vpow.pop %v560
    %v562 = vmul.f32 %v490, 1.442695
    %v563 = vpow.pop %v562
    %v564 = vmul.f32 %v491, 1.442695
    %v565 = vpow.pop %v564
    %v566 = vmul.f32 %v492, 1.442695
    %v567 = vpow.pop %v566
    %v568 = vmul.f32 %v493, 1.442695
    %v569 = vpow.pop %v568
    %v570 = vmul.f32 %v494, 1.442695
    %v571 = vpow.pop %v570
    %v572 = vmul.f32 %v495, 1.442695
    %v573 = vpow.pop %v572
    %v574 = vmul.f32 %v496, 1.442695
    %v575 = vpow.pop %v574
    %v576 = vmul.f32 %v497, 1.442695
    %v577 = vpow.pop %v576
    %v578 = vmul.f32 %v498, 1.442695
    %v579 = vpow.pop %v578
    %v580 = vmul.f32 %v499, 1.442695
    %v581 = vpow.pop %v580
    %v582 = vmul.f32 %v500, 1.442695
    %v583 = vpow.pop %v582
    %v584 = vmul.f32 %v501, 1.442695
    %v585 = vpow.pop %v584
    %v586 = vmul.f32 %v502, 1.442695
    %v587 = vpow.pop %v586
    %v588 = vmul.f32 %v503, 1.442695
    %v589 = vpow.pop %v588
    %v590 = vmul.f32 %v504, 1.442695
    %v591 = vpow.pop %v590
    %v592 = vmul.f32 %v505, 1.442695
    %v593 = vpow.pop %v592
    %v594 = vmul.f32 %v506, 1.442695
    %v595 = vpow.pop %v594
    %v596 = vmul.f32 %v507, 1.442695
    %v597 = vpow.pop %v596
    %v598 = vmul.f32 %v508, 1.442695
    %v599 = vpow.pop %v598
    %v600 = vmul.f32 %v509, 1.442695
    %v601 = vpow.pop %v600
    %v602 = vmul.f32 %v510, 1.442695
    %v603 = vpow.pop %v602
    %v604 = vmul.f32 %v511, 1.442695
    %v605 = vpow.pop %v604
    %v606 = vmul.f32 %v512, 1.442695
    %v607 = vpow.pop %v606
    %v608 = vmul.f32 %v513, 1.442695
    %v609 = vpow.pop %v608
    %v610 = vadd.f32 %v515, 1.0
    %v611 = vadd.f32 %v517, 1.0
    %v612 = vadd.f32 %v519, 1.0
    %v613 = vadd.f32 %v521, 1.0
    %v614 = vadd.f32 %v523, 1.0
    %v615 = vadd.f32 %v525, 1.0
    %v616 = vadd.f32 %v527, 1.0
    %v617 = vadd.f32 %v529, 1.0
    %v618 = vadd.f32 %v531, 1.0
    %v619 = vadd.f32 %v533, 1.0
    %v620 = vadd.f32 %v535, 1.0
    %v621 = vadd.f32 %v537, 1.0
    %v622 = vadd.f32 %v539, 1.0
    %v623 = vadd.f32 %v541, 1.0
    %v624 = vadd.f32 %v543, 1.0
    %v625 = vadd.f32 %v545, 1.0
    %v626 = vadd.f32 %v547, 1.0
    %v627 = vadd.f32 %v549, 1.0
    %v628 = vadd.f32 %v551, 1.0
    %v629 = vadd.f32 %v553, 1.0
    %v630 = vadd.f32 %v555, 1.0
    %v631 = vadd.f32 %v557, 1.0
    %v632 = vadd.f32 %v559, 1.0
    %v633 = vadd.f32 %v561, 1.0
    %v634 = vadd.f32 %v563, 1.0
    %v635 = vadd.f32 %v565, 1.0
    %v636 = vadd.f32 %v567, 1.0
    %v637 = vadd.f32 %v569, 1.0
    %v638 = vadd.f32 %v571, 1.0
    %v639 = vadd.f32 %v573, 1.0
    %v640 = vadd.f32 %v575, 1.0
    %v641 = vadd.f32 %v577, 1.0
    %v642 = vadd.f32 %v579, 1.0
    %v643 = vadd.f32 %v581, 1.0
    %v644 = vadd.f32 %v583, 1.0
    %v645 = vadd.f32 %v585, 1.0
    %v646 = vadd.f32 %v587, 1.0
    %v647 = vadd.f32 %v589, 1.0
    %v648 = vadd.f32 %v591, 1.0
    %v649 = vadd.f32 %v593, 1.0
    %v650 = vadd.f32 %v595, 1.0
    %v651 = vadd.f32 %v597, 1.0
    %v652 = vadd.f32 %v599, 1.0
    %v653 = vadd.f32 %v601, 1.0
    %v654 = vadd.f32 %v603, 1.0
    %v655 = vadd.f32 %v605, 1.0
    %v656 = vadd.f32 %v607, 1.0
    %v657 = vadd.f32 %v609, 1.0
    %v658 = vrcp.pop %v610
    %v659 = vmul.f32 1.0, %v658
    %v660 = vrcp.pop %v611
    %v661 = vmul.f32 1.0, %v660
    %v662 = vrcp.pop %v612
    %v663 = vmul.f32 1.0, %v662
    %v664 = vrcp.pop %v613
    %v665 = vmul.f32 1.0, %v664
    %v666 = vrcp.pop %v614
    %v667 = vmul.f32 1.0, %v666
    %v668 = vrcp.pop %v615
    %v669 = vmul.f32 1.0, %v668
    %v670 = vrcp.pop %v616
    %v671 = vmul.f32 1.0, %v670
    %v672 = vrcp.pop %v617
    %v673 = vmul.f32 1.0, %v672
    %v674 = vrcp.pop %v618
    %v675 = vmul.f32 1.0, %v674
    %v676 = vrcp.pop %v619
    %v677 = vmul.f32 1.0, %v676
    %v678 = vrcp.pop %v620
    %v679 = vmul.f32 1.0, %v678
    %v680 = vrcp.pop %v621
    %v681 = vmul.f32 1.0, %v680
    %v682 = vrcp.pop %v622
    %v683 = vmul.f32 1.0, %v682
    %v684 = vrcp.pop %v623
    %v685 = vmul.f32 1.0, %v684
    %v686 = vrcp.pop %v624
    %v687 = vmul.f32 1.0, %v686
    %v688 = vrcp.pop %v625
    %v689 = vmul.f32 1.0, %v688
    %v690 = vrcp.pop %v626
    %v691 = vmul.f32 1.0, %v690
    %v692 = vrcp.pop %v627
    %v693 = vmul.f32 1.0, %v692
    %v694 = vrcp.pop %v628
    %v695 = vmul.f32 1.0, %v694
    %v696 = vrcp.pop %v629
    %v697 = vmul.f32 1.0, %v696
    %v698 = vrcp.pop %v630
    %v699 = vmul.f32 1.0, %v698
    %v700 = vrcp.pop %v631
    %v701 = vmul.f32 1.0, %v700
    %v702 = vrcp.pop %v632
    %v703 = vmul.f32 1.0, %v702
    %v704 = vrcp.pop %v633
    %v705 = vmul.f32 1.0, %v704
    %v706 = vrcp.pop %v634
    %v707 = vmul.f32 1.0, %v706
    %v708 = vrcp.pop %v635
    %v709 = vmul.f32 1.0, %v708
    %v710 = vrcp.pop %v636
    %v711 = vmul.f32 1.0, %v710
    %v712 = vrcp.pop %v637
    %v713 = vmul.f32 1.0, %v712
    %v714 = vrcp.pop %v638
    %v715 = vmul.f32 1.0, %v714
    %v716 = vrcp.pop %v639
    %v717 = vmul.f32 1.0, %v716
    %v718 = vrcp.pop %v640
    %v719 = vmul.f32 1.0, %v718
    %v720 = vrcp.pop %v641
    %v721 = vmul.f32 1.0, %v720
    %v722 = vrcp.pop %v642
    %v723 = vmul.f32 1.0, %v722
    %v724 = vrcp.pop %v643
    %v725 = vmul.f32 1.0, %v724
    %v726 = vrcp.pop %v644
    %v727 = vmul.f32 1.0, %v726
    %v728 = vrcp.pop %v645
    %v729 = vmul.f32 1.0, %v728
    %v730 = vrcp.pop %v646
    %v731 = vmul.f32 1.0, %v730
    %v732 = vrcp.pop %v647
    %v733 = vmul.f32 1.0, %v732
    %v734 = vrcp.pop %v648
    %v735 = vmul.f32 1.0, %v734
    %v736 = vrcp.pop %v649
    %v737 = vmul.f32 1.0, %v736
    %v738 = vrcp.pop %v650
    %v739 = vmul.f32 1.0, %v738
    %v740 = vrcp.pop %v651
    %v741 = vmul.f32 1.0, %v740
    %v742 = vrcp.pop %v652
    %v743 = vmul.f32 1.0, %v742
    %v744 = vrcp.pop %v653
    %v745 = vmul.f32 1.0, %v744
    %v746 = vrcp.pop %v654
    %v747 = vmul.f32 1.0, %v746
    %v748 = vrcp.pop %v655
    %v749 = vmul.f32 1.0, %v748
    %v750 = vrcp.pop %v656
    %v751 = vmul.f32 1.0, %v750
    %v752 = vrcp.pop %v657
    %v753 = vmul.f32 1.0, %v752
    %754 = vst [vmem:[#allocation2] sm:$0xff] %v659
    %755 = vst [vmem:[#allocation2 + $0x8] sm:$0xff] %v661
    %756 = vst [vmem:[#allocation2 + $0x10] sm:$0xff] %v663
    %757 = vst [vmem:[#allocation2 + $0x18] sm:$0xff] %v665
    %758 = vst [vmem:[#allocation2 + $0x20] sm:$0xff] %v667
    %vm759 = vcmask 293888
    %760 = vst.msk [vmem:[#allocation2 + $0x28] sm:$0xff] %vm759, %v669
    %761 = vst [vmem:[#allocation2 + $0x30] sm:$0xff] %v671
    %762 = vst [vmem:[#allocation2 + $0x38] sm:$0xff] %v673
    %763 = vst [vmem:[#allocation2 + $0x40] sm:$0xff] %v675
    %764 = vst [vmem:[#allocation2 + $0x48] sm:$0xff] %v677
    %765 = vst [vmem:[#allocation2 + $0x50] sm:$0xff] %v679
    %766 = vst.msk [vmem:[#allocation2 + $0x58] sm:$0xff] %vm759, %v681
    %767 = vst [vmem:[#allocation2 + $0x60] sm:$0xff] %v683
    %768 = vst [vmem:[#allocation2 + $0x68] sm:$0xff] %v685
    %769 = vst [vmem:[#allocation2 + $0x70] sm:$0xff] %v687
    %770 = vst [vmem:[#allocation2 + $0x78] sm:$0xff] %v689
    %771 = vst [vmem:[#allocation2 + $0x80] sm:$0xff] %v691
    %772 = vst.msk [vmem:[#allocation2 + $0x88] sm:$0xff] %vm759, %v693
    %773 = vst [vmem:[#allocation2 + $0x90] sm:$0xff] %v695
    %774 = vst [vmem:[#allocation2 + $0x98] sm:$0xff] %v697
    %775 = vst [vmem:[#allocation2 + $0xa0] sm:$0xff] %v699
    %776 = vst [vmem:[#allocation2 + $0xa8] sm:$0xff] %v701
    %777 = vst [vmem:[#allocation2 + $0xb0] sm:$0xff] %v703
    %778 = vst.msk [vmem:[#allocation2 + $0xb8] sm:$0xff] %vm759, %v705
    %779 = vst [vmem:[#allocation2 + $0xc0] sm:$0xff] %v707
    %780 = vst [vmem:[#allocation2 + $0xc8] sm:$0xff] %v709
    %781 = vst [vmem:[#allocation2 + $0xd0] sm:$0xff] %v711
    %782 = vst [vmem:[#allocation2 + $0xd8] sm:$0xff] %v713
    %783 = vst [vmem:[#allocation2 + $0xe0] sm:$0xff] %v715
    %784 = vst.msk [vmem:[#allocation2 + $0xe8] sm:$0xff] %vm759, %v717
    %785 = vst [vmem:[#allocation2 + $0xf0] sm:$0xff] %v719
    %786 = vst [vmem:[#allocation2 + $0xf8] sm:$0xff] %v721
    %787 = vst [vmem:[#allocation2 + $0x100] sm:$0xff] %v723
    %788 = vst [vmem:[#allocation2 + $0x108] sm:$0xff] %v725
    %789 = vst [vmem:[#allocation2 + $0x110] sm:$0xff] %v727
    %790 = vst.msk [vmem:[#allocation2 + $0x118] sm:$0xff] %vm759, %v729
    %791 = vst [vmem:[#allocation2 + $0x120] sm:$0xff] %v731
    %792 = vst [vmem:[#allocation2 + $0x128] sm:$0xff] %v733
    %793 = vst [vmem:[#allocation2 + $0x130] sm:$0xff] %v735
    %794 = vst [vmem:[#allocation2 + $0x138] sm:$0xff] %v737
    %795 = vst [vmem:[#allocation2 + $0x140] sm:$0xff] %v739
    %796 = vst.msk [vmem:[#allocation2 + $0x148] sm:$0xff] %vm759, %v741
    %797 = vst [vmem:[#allocation2 + $0x150] sm:$0xff] %v743
    %798 = vst [vmem:[#allocation2 + $0x158] sm:$0xff] %v745
    %799 = vst [vmem:[#allocation2 + $0x160] sm:$0xff] %v747
    %800 = vst [vmem:[#allocation2 + $0x168] sm:$0xff] %v749
    %801 = vst [vmem:[#allocation2 + $0x170] sm:$0xff] %v751
    %802 = vst.msk [vmem:[#allocation2 + $0x178] sm:$0xff] %vm759, %v753
    %s803 = scalar_lea.vmem %s0, 96
    %v804 = vld [vmem:[%s803] sm:$0xff]
    %v805 = vld [vmem:[%s803 + $0x8] sm:$0xff]
    %v806 = vld [vmem:[%s803 + $0x10] sm:$0xff]
    %v807 = vld [vmem:[%s803 + $0x18] sm:$0xff]
    %v808 = vld [vmem:[%s803 + $0x20] sm:$0xff]
    %v809 = vld [vmem:[%s803 + $0x28] sm:$0xff]
    %v810 = vld [vmem:[%s803 + $0x30] sm:$0x1]
    %v811 = vld [vmem:[%s803 + $0x38] sm:$0x1]
    %v812 = vld [vmem:[%s803 + $0x40] sm:$0x1]
    %v813 = vld [vmem:[%s803 + $0x48] sm:$0x1]
    %v814 = vld [vmem:[%s803 + $0x50] sm:$0x1]
    %v815 = vld [vmem:[%s803 + $0x58] sm:$0x1]
    %v817 = vsel %vm108, %v810, 0
    %v820 = vsel %vm108, %v811, 0
    %v823 = vsel %vm108, %v812, 0
    %v826 = vsel %vm108, %v813, 0
    %v829 = vsel %vm108, %v814, 0
    %v832 = vsel %vm108, %v815, 0
    %834 = vmatprep.subr.mxu0 %v805
    %835 = vmatpush1.msra.mxu0 %v804
    %836 = vmatprep.subr.mxu0 %v820
    %837 = vmatpush1.msra.mxu0 %v817
    %838 = vmatprep.subr.mxu0 0.0
    %839 = vmatpush1.msra.mxu0 0.0
    %840 = vmatprep.subr.mxu0 0.0
    %841 = vmatpush1.msra.mxu0 0.0
    %842 = vmatprep.subr.mxu0 0.0
    %843 = vmatpush1.msra.mxu0 0.0
    %844 = vmatprep.subr.mxu0 0.0
    %845 = vmatpush1.msra.mxu0 0.0
    %846 = vmatprep.subr.mxu0 0.0
    %847 = vmatpush1.msra.mxu0 0.0
    %848 = vmatprep.subr.mxu0 0.0
    %849 = vmatpush1.msra.mxu0 0.0
    %850 = vmatprep.subr.mxu0 0.0
    %851 = vmatpush1.msra.mxu0 0.0
    %852 = vmatprep.subr.mxu0 0.0
    %853 = vmatpush1.msra.mxu0 0.0
    %854 = vmatprep.subr.mxu0 0.0
    %855 = vmatpush1.msra.mxu0 0.0
    %856 = vmatprep.subr.mxu0 0.0
    %857 = vmatpush1.msra.mxu0 0.0
    %858 = vmatprep.subr.mxu0 0.0
    %859 = vmatpush1.msra.mxu0 0.0
    %860 = vmatprep.subr.mxu0 0.0
    %861 = vmatpush1.msra.mxu0 0.0
    %862 = vmatprep.subr.mxu0 0.0
    %863 = vmatpush1.msra.mxu0 0.0
    %864 = vmatprep.subr.mxu0 0.0
    %865 = vmatpush1.msra.mxu0 0.0
    %866 = vmatprep.subr.mxu0 0.0
    %867 = vmatpush1.msra.mxu0 0.0
    %868 = vmatprep.subr.mxu0 0.0
    %869 = vmatpush1.msra.mxu0 0.0
    %870 = vmatprep.subr.mxu0 0.0
    %871 = vmatpush1.msra.mxu0 0.0
    %872 = vmatprep.subr.mxu0 0.0
    %873 = vmatpush1.msra.mxu0 0.0
    %874 = vmatprep.subr.mxu0 0.0
    %875 = vmatpush1.msra.mxu0 0.0
    %876 = vmatprep.subr.mxu0 0.0
    %877 = vmatpush1.msra.mxu0 0.0
    %878 = vmatprep.subr.mxu0 0.0
    %879 = vmatpush1.msra.mxu0 0.0
    %880 = vmatprep.subr.mxu0 0.0
    %881 = vmatpush1.msra.mxu0 0.0
    %882 = vmatprep.subr.mxu0 0.0
    %883 = vmatpush1.msra.mxu0 0.0
    %884 = vmatprep.subr.mxu0 0.0
    %885 = vmatpush1.msra.mxu0 0.0
    %886 = vmatprep.subr.mxu0 0.0
    %887 = vmatpush1.msra.mxu0 0.0
    %888 = vmatprep.subr.mxu0 0.0
    %889 = vmatpush1.msra.mxu0 0.0
    %890 = vmatprep.subr.mxu0 0.0
    %891 = vmatpush1.msra.mxu0 0.0
    %892 = vmatprep.subr.mxu0 0.0
    %893 = vmatpush1.msra.mxu0 0.0
    %894 = vmatprep.subr.mxu0 0.0
    %895 = vmatpush1.msra.mxu0 0.0
    %896 = vmatprep.subr.mxu0 0.0
    %897 = vmatpush1.msra.mxu0 0.0
    %898 = vmatprep.mubr.f32.mxu0 0.0
    %899 = vmatmul.mubr.f32.gmra.mrb[0].mxu0 %v85
    %v900 = vpop.f32.mrb[0].mxu0
    %v901 = vadd.f32 %v46, %v900
    %v902 = vpop.f32.mrb[0].mxu0
    %v903 = vadd.f32 %v46, %v902
    %904 = vmatprep.mubr.f32.mxu0 0.0
    %905 = vmatmul.mubr.f32.gmra.mrb[0].mxu0 %v88
    %v906 = vpop.f32.mrb[0].mxu0
    %v907 = vadd.f32 %v51, %v906
    %v908 = vpop.f32.mrb[0].mxu0
    %v909 = vadd.f32 %v51, %v908
    %910 = vmatprep.mubr.f32.mxu0 0.0
    %911 = vmatmul.mubr.f32.gmra.mrb[0].mxu0 %v91
    %v912 = vpop.f32.mrb[0].mxu0
    %v913 = vadd.f32 %v56, %v912
    %v914 = vpop.f32.mrb[0].mxu0
    %v915 = vadd.f32 %v56, %v914
    %916 = vmatprep.mubr.f32.mxu0 0.0
    %917 = vmatmul.mubr.f32.gmra.mrb[0].mxu0 %v94
    %v918 = vpop.f32.mrb[0].mxu0
    %v919 = vadd.f32 %v61, %v918
    %v920 = vpop.f32.mrb[0].mxu0
    %v921 = vadd.f32 %v61, %v920
    %922 = vmatprep.mubr.f32.mxu0 0.0
    %923 = vmatmul.mubr.f32.gmra.mrb[0].mxu0 %v97
    %v924 = vpop.f32.mrb[0].mxu0
    %v925 = vadd.f32 %v66, %v924
    %v926 = vpop.f32.mrb[0].mxu0
    %v927 = vadd.f32 %v66, %v926
    %928 = vmatprep.mubr.f32.mxu0 0.0
    %929 = vmatmul.mubr.f32.gmra.mrb[0].mxu0 %v100
    %v930 = vpop.f32.mrb[0].mxu0
    %v931 = vadd.f32 %v71, %v930
    %v932 = vpop.f32.mrb[0].mxu0
    %v933 = vadd.f32 %v71, %v932
    %934 = vmatprep.mubr.f32.mxu0 0.0
    %935 = vmatmul.mubr.f32.gmra.mrb[0].mxu0 %v103
    %v936 = vpop.f32.mrb[0].mxu0
    %v937 = vadd.f32 %v76, %v936
    %v938 = vpop.f32.mrb[0].mxu0
    %v939 = vadd.f32 %v76, %v938
    %940 = vmatprep.mubr.f32.mxu0 0.0
    %941 = vmatmul.mubr.f32.gmra.mrb[0].mxu0 %v106
    %v942 = vpop.f32.mrb[0].mxu0
    %v943 = vadd.f32 %v81, %v942
    %v944 = vpop.f32.mrb[0].mxu0
    %v945 = vadd.f32 %v81, %v944
    %946 = vdwg.mxu0
    %947 = vmatprep.subr.mxu0 %v807
    %948 = vmatpush1.msra.mxu0 %v806
    %949 = vmatprep.subr.mxu0 %v826
    %950 = vmatpush1.msra.mxu0 %v823
    %951 = vmatprep.subr.mxu0 0.0
    %952 = vmatpush1.msra.mxu0 0.0
    %953 = vmatprep.subr.mxu0 0.0
    %954 = vmatpush1.msra.mxu0 0.0
    %955 = vmatprep.subr.mxu0 0.0
    %956 = vmatpush1.msra.mxu0 0.0
    %957 = vmatprep.subr.mxu0 0.0
    %958 = vmatpush1.msra.mxu0 0.0
    %959 = vmatprep.subr.mxu0 0.0
    %960 = vmatpush1.msra.mxu0 0.0
    %961 = vmatprep.subr.mxu0 0.0
    %962 = vmatpush1.msra.mxu0 0.0
    %963 = vmatprep.subr.mxu0 0.0
    %964 = vmatpush1.msra.mxu0 0.0
    %965 = vmatprep.subr.mxu0 0.0
    %966 = vmatpush1.msra.mxu0 0.0
    %967 = vmatprep.subr.mxu0 0.0
    %968 = vmatpush1.msra.mxu0 0.0
    %969 = vmatprep.subr.mxu0 0.0
    %970 = vmatpush1.msra.mxu0 0.0
    %971 = vmatprep.subr.mxu0 0.0
    %972 = vmatpush1.msra.mxu0 0.0
    %973 = vmatprep.subr.mxu0 0.0
    %974 = vmatpush1.msra.mxu0 0.0
    %975 = vmatprep.subr.mxu0 0.0
    %976 = vmatpush1.msra.mxu0 0.0
    %977 = vmatprep.subr.mxu0 0.0
    %978 = vmatpush1.msra.mxu0 0.0
    %979 = vmatprep.subr.mxu0 0.0
    %980 = vmatpush1.msra.mxu0 0.0
    %981 = vmatprep.subr.mxu0 0.0
    %982 = vmatpush1.msra.mxu0 0.0
    %983 = vmatprep.subr.mxu0 0.0
    %984 = vmatpush1.msra.mxu0 0.0
    %985 = vmatprep.subr.mxu0 0.0
    %986 = vmatpush1.msra.mxu0 0.0
    %987 = vmatprep.subr.mxu0 0.0
    %988 = vmatpush1.msra.mxu0 0.0
    %989 = vmatprep.subr.mxu0 0.0
    %990 = vmatpush1.msra.mxu0 0.0
    %991 = vmatprep.subr.mxu0 0.0
    %992 = vmatpush1.msra.mxu0 0.0
    %993 = vmatprep.subr.mxu0 0.0
    %994 = vmatpush1.msra.mxu0 0.0
    %995 = vmatprep.subr.mxu0 0.0
    %996 = vmatpush1.msra.mxu0 0.0
    %997 = vmatprep.subr.mxu0 0.0
    %998 = vmatpush1.msra.mxu0 0.0
    %999 = vmatprep.subr.mxu0 0.0
    %1000 = vmatpush1.msra.mxu0 0.0
    %1001 = vmatprep.subr.mxu0 0.0
    %1002 = vmatpush1.msra.mxu0 0.0
    %1003 = vmatprep.subr.mxu0 0.0
    %1004 = vmatpush1.msra.mxu0 0.0
    %1005 = vmatprep.subr.mxu0 0.0
    %1006 = vmatpush1.msra.mxu0 0.0
    %1007 = vmatprep.subr.mxu0 0.0
    %1008 = vmatpush1.msra.mxu0 0.0
    %1009 = vmatprep.subr.mxu0 0.0
    %1010 = vmatpush1.msra.mxu0 0.0
    %1011 = vmatprep.mubr.f32.mxu0 0.0
    %1012 = vmatmul.mubr.f32.gmra.mrb[0].mxu0 %v85
    %v1013 = vpop.f32.mrb[0].mxu0
    %v1014 = vadd.f32 %v46, %v1013
    %v1015 = vpop.f32.mrb[0].mxu0
    %v1016 = vadd.f32 %v46, %v1015
    %1017 = vmatprep.mubr.f32.mxu0 0.0
    %1018 = vmatmul.mubr.f32.gmra.mrb[0].mxu0 %v88
    %v1019 = vpop.f32.mrb[0].mxu0
    %v1020 = vadd.f32 %v51, %v1019
    %v1021 = vpop.f32.mrb[0].mxu0
    %v1022 = vadd.f32 %v51, %v1021
    %1023 = vmatprep.mubr.f32.mxu0 0.0
    %1024 = vmatmul.mubr.f32.gmra.mrb[0].mxu0 %v91
    %v1025 = vpop.f32.mrb[0].mxu0
    %v1026 = vadd.f32 %v56, %v1025
    %v1027 = vpop.f32.mrb[0].mxu0
    %v1028 = vadd.f32 %v56, %v1027
    %1029 = vmatprep.mubr.f32.mxu0 0.0
    %1030 = vmatmul.mubr.f32.gmra.mrb[0].mxu0 %v94
    %v1031 = vpop.f32.mrb[0].mxu0
    %v1032 = vadd.f32 %v61, %v1031
    %v1033 = vpop.f32.mrb[0].mxu0
    %v1034 = vadd.f32 %v61, %v1033
    %1035 = vmatprep.mubr.f32.mxu0 0.0
    %1036 = vmatmul.mubr.f32.gmra.mrb[0].mxu0 %v97
    %v1037 = vpop.f32.mrb[0].mxu0
    %v1038 = vadd.f32 %v66, %v1037
    %v1039 = vpop.f32.mrb[0].mxu0
    %v1040 = vadd.f32 %v66, %v1039
    %1041 = vmatprep.mubr.f32.mxu0 0.0
    %1042 = vmatmul.mubr.f32.gmra.mrb[0].mxu0 %v100
    %v1043 = vpop.f32.mrb[0].mxu0
    %v1044 = vadd.f32 %v71, %v1043
    %v1045 = vpop.f32.mrb[0].mxu0
    %v1046 = vadd.f32 %v71, %v1045
    %1047 = vmatprep.mubr.f32.mxu0 0.0
    %1048 = vmatmul.mubr.f32.gmra.mrb[0].mxu0 %v103
    %v1049 = vpop.f32.mrb[0].mxu0
    %v1050 = vadd.f32 %v76, %v1049
    %v1051 = vpop.f32.mrb[0].mxu0
    %v1052 = vadd.f32 %v76, %v1051
    %1053 = vmatprep.mubr.f32.mxu0 0.0
    %1054 = vmatmul.mubr.f32.gmra.mrb[0].mxu0 %v106
    %v1055 = vpop.f32.mrb[0].mxu0
    %v1056 = vadd.f32 %v81, %v1055
    %v1057 = vpop.f32.mrb[0].mxu0
    %v1058 = vadd.f32 %v81, %v1057
    %1059 = vdwg.mxu0
    %1060 = vmatprep.subr.mxu0 %v809
    %1061 = vmatpush1.msra.mxu0 %v808
    %1062 = vmatprep.subr.mxu0 %v832
    %1063 = vmatpush1.msra.mxu0 %v829
    %1064 = vmatprep.subr.mxu0 0.0
    %1065 = vmatpush1.msra.mxu0 0.0
    %1066 = vmatprep.subr.mxu0 0.0
    %1067 = vmatpush1.msra.mxu0 0.0
    %1068 = vmatprep.subr.mxu0 0.0
    %1069 = vmatpush1.msra.mxu0 0.0
    %1070 = vmatprep.subr.mxu0 0.0
    %1071 = vmatpush1.msra.mxu0 0.0
    %1072 = vmatprep.subr.mxu0 0.0
    %1073 = vmatpush1.msra.mxu0 0.0
    %1074 = vmatprep.subr.mxu0 0.0
    %1075 = vmatpush1.msra.mxu0 0.0
    %1076 = vmatprep.subr.mxu0 0.0
    %1077 = vmatpush1.msra.mxu0 0.0
    %1078 = vmatprep.subr.mxu0 0.0
    %1079 = vmatpush1.msra.mxu0 0.0
    %1080 = vmatprep.subr.mxu0 0.0
    %1081 = vmatpush1.msra.mxu0 0.0
    %1082 = vmatprep.subr.mxu0 0.0
    %1083 = vmatpush1.msra.mxu0 0.0
    %1084 = vmatprep.subr.mxu0 0.0
    %1085 = vmatpush1.msra.mxu0 0.0
    %1086 = vmatprep.subr.mxu0 0.0
    %1087 = vmatpush1.msra.mxu0 0.0
    %1088 = vmatprep.subr.mxu0 0.0
    %1089 = vmatpush1.msra.mxu0 0.0
    %1090 = vmatprep.subr.mxu0 0.0
    %1091 = vmatpush1.msra.mxu0 0.0
    %1092 = vmatprep.subr.mxu0 0.0
    %1093 = vmatpush1.msra.mxu0 0.0
    %1094 = vmatprep.subr.mxu0 0.0
    %1095 = vmatpush1.msra.mxu0 0.0
    %1096 = vmatprep.subr.mxu0 0.0
    %1097 = vmatpush1.msra.mxu0 0.0
    %1098 = vmatprep.subr.mxu0 0.0
    %1099 = vmatpush1.msra.mxu0 0.0
    %1100 = vmatprep.subr.mxu0 0.0
    %1101 = vmatpush1.msra.mxu0 0.0
    %1102 = vmatprep.subr.mxu0 0.0
    %1103 = vmatpush1.msra.mxu0 0.0
    %1104 = vmatprep.subr.mxu0 0.0
    %1105 = vmatpush1.msra.mxu0 0.0
    %1106 = vmatprep.subr.mxu0 0.0
    %1107 = vmatpush1.msra.mxu0 0.0
    %1108 = vmatprep.subr.mxu0 0.0
    %1109 = vmatpush1.msra.mxu0 0.0
    %1110 = vmatprep.subr.mxu0 0.0
    %1111 = vmatpush1.msra.mxu0 0.0
    %1112 = vmatprep.subr.mxu0 0.0
    %1113 = vmatpush1.msra.mxu0 0.0
    %1114 = vmatprep.subr.mxu0 0.0
    %1115 = vmatpush1.msra.mxu0 0.0
    %1116 = vmatprep.subr.mxu0 0.0
    %1117 = vmatpush1.msra.mxu0 0.0
    %1118 = vmatprep.subr.mxu0 0.0
    %1119 = vmatpush1.msra.mxu0 0.0
    %1120 = vmatprep.subr.mxu0 0.0
    %1121 = vmatpush1.msra.mxu0 0.0
    %1122 = vmatprep.subr.mxu0 0.0
    %1123 = vmatpush1.msra.mxu0 0.0
    %1124 = vmatprep.mubr.f32.mxu0 0.0
    %1125 = vmatmul.mubr.f32.gmra.mrb[0].mxu0 %v85
    %v1126 = vpop.f32.mrb[0].mxu0
    %v1127 = vadd.f32 %v46, %v1126
    %v1128 = vpop.f32.mrb[0].mxu0
    %v1129 = vadd.f32 %v46, %v1128
    %1130 = vmatprep.mubr.f32.mxu0 0.0
    %1131 = vmatmul.mubr.f32.gmra.mrb[0].mxu0 %v88
    %v1132 = vpop.f32.mrb[0].mxu0
    %v1133 = vadd.f32 %v51, %v1132
    %v1134 = vpop.f32.mrb[0].mxu0
    %v1135 = vadd.f32 %v51, %v1134
    %1136 = vmatprep.mubr.f32.mxu0 0.0
    %1137 = vmatmul.mubr.f32.gmra.mrb[0].mxu0 %v91
    %v1138 = vpop.f32.mrb[0].mxu0
    %v1139 = vadd.f32 %v56, %v1138
    %v1140 = vpop.f32.mrb[0].mxu0
    %v1141 = vadd.f32 %v56, %v1140
    %1142 = vmatprep.mubr.f32.mxu0 0.0
    %1143 = vmatmul.mubr.f32.gmra.mrb[0].mxu0 %v94
    %v1144 = vpop.f32.mrb[0].mxu0
    %v1145 = vadd.f32 %v61, %v1144
    %v1146 = vpop.f32.mrb[0].mxu0
    %v1147 = vadd.f32 %v61, %v1146
    %1148 = vmatprep.mubr.f32.mxu0 0.0
    %1149 = vmatmul.mubr.f32.gmra.mrb[0].mxu0 %v97
    %v1150 = vpop.f32.mrb[0].mxu0
    %v1151 = vadd.f32 %v66, %v1150
    %v1152 = vpop.f32.mrb[0].mxu0
    %v1153 = vadd.f32 %v66, %v1152
    %1154 = vmatprep.mubr.f32.mxu0 0.0
    %1155 = vmatmul.mubr.f32.gmra.mrb[0].mxu0 %v100
    %v1156 = vpop.f32.mrb[0].mxu0
    %v1157 = vadd.f32 %v71, %v1156
    %v1158 = vpop.f32.mrb[0].mxu0
    %v1159 = vadd.f32 %v71, %v1158
    %1160 = vmatprep.mubr.f32.mxu0 0.0
    %1161 = vmatmul.mubr.f32.gmra.mrb[0].mxu0 %v103
    %v1162 = vpop.f32.mrb[0].mxu0
    %v1163 = vadd.f32 %v76, %v1162
    %v1164 = vpop.f32.mrb[0].mxu0
    %v1165 = vadd.f32 %v76, %v1164
    %1166 = vmatprep.mubr.f32.mxu0 0.0
    %1167 = vmatmul.mubr.f32.gmra.mrb[0].mxu0 %v106
    %v1168 = vpop.f32.mrb[0].mxu0
    %v1169 = vadd.f32 %v81, %v1168
    %v1170 = vpop.f32.mrb[0].mxu0
    %v1171 = vadd.f32 %v81, %v1170
    %1172 = vdwg.mxu0
    %v1173 = vxor.u32 %v901, 2147483648
    %v1174 = vxor.u32 %v903, 2147483648
    %v1175 = vxor.u32 %v1014, 2147483648
    %v1176 = vxor.u32 %v1016, 2147483648
    %v1177 = vxor.u32 %v1127, 2147483648
    %v1178 = vxor.u32 %v1129, 2147483648
    %v1179 = vxor.u32 %v907, 2147483648
    %v1180 = vxor.u32 %v909, 2147483648
    %v1181 = vxor.u32 %v1020, 2147483648
    %v1182 = vxor.u32 %v1022, 2147483648
    %v1183 = vxor.u32 %v1133, 2147483648
    %v1184 = vxor.u32 %v1135, 2147483648
    %v1185 = vxor.u32 %v913, 2147483648
    %v1186 = vxor.u32 %v915, 2147483648
    %v1187 = vxor.u32 %v1026, 2147483648
    %v1188 = vxor.u32 %v1028, 2147483648
    %v1189 = vxor.u32 %v1139, 2147483648
    %v1190 = vxor.u32 %v1141, 2147483648
    %v1191 = vxor.u32 %v919, 2147483648
    %v1192 = vxor.u32 %v921, 2147483648
    %v1193 = vxor.u32 %v1032, 2147483648
    %v1194 = vxor.u32 %v1034, 2147483648
    %v1195 = vxor.u32 %v1145, 2147483648
    %v1196 = vxor.u32 %v1147, 2147483648
    %v1197 = vxor.u32 %v925, 2147483648
    %v1198 = vxor.u32 %v927, 2147483648
    %v1199 = vxor.u32 %v1038, 2147483648
    %v1200 = vxor.u32 %v1040, 2147483648
    %v1201 = vxor.u32 %v1151, 2147483648
    %v1202 = vxor.u32 %v1153, 2147483648
    %v1203 = vxor.u32 %v931, 2147483648
    %v1204 = vxor.u32 %v933, 2147483648
    %v1205 = vxor.u32 %v1044, 2147483648
    %v1206 = vxor.u32 %v1046, 2147483648
    %v1207 = vxor.u32 %v1157, 2147483648
    %v1208 = vxor.u32 %v1159, 2147483648
    %v1209 = vxor.u32 %v937, 2147483648
    %v1210 = vxor.u32 %v939, 2147483648
    %v1211 = vxor.u32 %v1050, 2147483648
    %v1212 = vxor.u32 %v1052, 2147483648
    %v1213 = vxor.u32 %v1163, 2147483648
    %v1214 = vxor.u32 %v1165, 2147483648
    %v1215 = vxor.u32 %v943, 2147483648
    %v1216 = vxor.u32 %v945, 2147483648
    %v1217 = vxor.u32 %v1056, 2147483648
    %v1218 = vxor.u32 %v1058, 2147483648
    %v1219 = vxor.u32 %v1169, 2147483648
    %v1220 = vxor.u32 %v1171, 2147483648
    %v1221 = vmul.f32 %v1173, 1.442695
    %v1222 = vpow.pop %v1221
    %v1223 = vmul.f32 %v1174, 1.442695
    %v1224 = vpow.pop %v1223
    %v1225 = vmul.f32 %v1175, 1.442695
    %v1226 = vpow.pop %v1225
    %v1227 = vmul.f32 %v1176, 1.442695
    %v1228 = vpow.pop %v1227
    %v1229 = vmul.f32 %v1177, 1.442695
    %v1230 = vpow.pop %v1229
    %v1231 = vmul.f32 %v1178, 1.442695
    %v1232 = vpow.pop %v1231
    %v1233 = vmul.f32 %v1179, 1.442695
    %v1234 = vpow.pop %v1233
    %v1235 = vmul.f32 %v1180, 1.442695
    %v1236 = vpow.pop %v1235
    %v1237 = vmul.f32 %v1181, 1.442695
    %v1238 = vpow.pop %v1237
    %v1239 = vmul.f32 %v1182, 1.442695
    %v1240 = vpow.pop %v1239
    %v1241 = vmul.f32 %v1183, 1.442695
    %v1242 = vpow.pop %v1241
    %v1243 = vmul.f32 %v1184, 1.442695
    %v1244 = vpow.pop %v1243
    %v1245 = vmul.f32 %v1185, 1.442695
    %v1246 = vpow.pop %v1245
    %v1247 = vmul.f32 %v1186, 1.442695
    %v1248 = vpow.pop %v1247
    %v1249 = vmul.f32 %v1187, 1.442695
    %v1250 = vpow.pop %v1249
    %v1251 = vmul.f32 %v1188, 1.442695
    %v1252 = vpow.pop %v1251
    %v1253 = vmul.f32 %v1189, 1.442695
    %v1254 = vpow.pop %v1253
    %v1255 = vmul.f32 %v1190, 1.442695
    %v1256 = vpow.pop %v1255
    %v1257 = vmul.f32 %v1191, 1.442695
    %v1258 = vpow.pop %v1257
    %v1259 = vmul.f32 %v1192, 1.442695
    %v1260 = vpow.pop %v1259
    %v1261 = vmul.f32 %v1193, 1.442695
    %v1262 = vpow.pop %v1261
    %v1263 = vmul.f32 %v1194, 1.442695
    %v1264 = vpow.pop %v1263
    %v1265 = vmul.f32 %v1195, 1.442695
    %v1266 = vpow.pop %v1265
    %v1267 = vmul.f32 %v1196, 1.442695
    %v1268 = vpow.pop %v1267
    %v1269 = vmul.f32 %v1197, 1.442695
    %v1270 = vpow.pop %v1269
    %v1271 = vmul.f32 %v1198, 1.442695
    %v1272 = vpow.pop %v1271
    %v1273 = vmul.f32 %v1199, 1.442695
    %v1274 = vpow.pop %v1273
    %v1275 = vmul.f32 %v1200, 1.442695
    %v1276 = vpow.pop %v1275
    %v1277 = vmul.f32 %v1201, 1.442695
    %v1278 = vpow.pop %v1277
    %v1279 = vmul.f32 %v1202, 1.442695
    %v1280 = vpow.pop %v1279
    %v1281 = vmul.f32 %v1203, 1.442695
    %v1282 = vpow.pop %v1281
    %v1283 = vmul.f32 %v1204, 1.442695
    %v1284 = vpow.pop %v1283
    %v1285 = vmul.f32 %v1205, 1.442695
    %v1286 = vpow.pop %v1285
    %v1287 = vmul.f32 %v1206, 1.442695
    %v1288 = vpow.pop %v1287
    %v1289 = vmul.f32 %v1207, 1.442695
    %v1290 = vpow.pop %v1289
    %v1291 = vmul.f32 %v1208, 1.442695
    %v1292 = vpow.pop %v1291
    %v1293 = vmul.f32 %v1209, 1.442695
    %v1294 = vpow.pop %v1293
    %v1295 = vmul.f32 %v1210, 1.442695
    %v1296 = vpow.pop %v1295
    %v1297 = vmul.f32 %v1211, 1.442695
    %v1298 = vpow.pop %v1297
    %v1299 = vmul.f32 %v1212, 1.442695
    %v1300 = vpow.pop %v1299
    %v1301 = vmul.f32 %v1213, 1.442695
    %v1302 = vpow.pop %v1301
    %v1303 = vmul.f32 %v1214, 1.442695
    %v1304 = vpow.pop %v1303
    %v1305 = vmul.f32 %v1215, 1.442695
    %v1306 = vpow.pop %v1305
    %v1307 = vmul.f32 %v1216, 1.442695
    %v1308 = vpow.pop %v1307
    %v1309 = vmul.f32 %v1217, 1.442695
    %v1310 = vpow.pop %v1309
    %v1311 = vmul.f32 %v1218, 1.442695
    %v1312 = vpow.pop %v1311
    %v1313 = vmul.f32 %v1219, 1.442695
    %v1314 = vpow.pop %v1313
    %v1315 = vmul.f32 %v1220, 1.442695
    %v1316 = vpow.pop %v1315
    %v1317 = vadd.f32 %v1222, 1.0
    %v1318 = vadd.f32 %v1224, 1.0
    %v1319 = vadd.f32 %v1226, 1.0
    %v1320 = vadd.f32 %v1228, 1.0
    %v1321 = vadd.f32 %v1230, 1.0
    %v1322 = vadd.f32 %v1232, 1.0
    %v1323 = vadd.f32 %v1234, 1.0
    %v1324 = vadd.f32 %v1236, 1.0
    %v1325 = vadd.f32 %v1238, 1.0
    %v1326 = vadd.f32 %v1240, 1.0
    %v1327 = vadd.f32 %v1242, 1.0
    %v1328 = vadd.f32 %v1244, 1.0
    %v1329 = vadd.f32 %v1246, 1.0
    %v1330 = vadd.f32 %v1248, 1.0
    %v1331 = vadd.f32 %v1250, 1.0
    %v1332 = vadd.f32 %v1252, 1.0
    %v1333 = vadd.f32 %v1254, 1.0
    %v1334 = vadd.f32 %v1256, 1.0
    %v1335 = vadd.f32 %v1258, 1.0
    %v1336 = vadd.f32 %v1260, 1.0
    %v1337 = vadd.f32 %v1262, 1.0
    %v1338 = vadd.f32 %v1264, 1.0
    %v1339 = vadd.f32 %v1266, 1.0
    %v1340 = vadd.f32 %v1268, 1.0
    %v1341 = vadd.f32 %v1270, 1.0
    %v1342 = vadd.f32 %v1272, 1.0
    %v1343 = vadd.f32 %v1274, 1.0
    %v1344 = vadd.f32 %v1276, 1.0
    %v1345 = vadd.f32 %v1278, 1.0
    %v1346 = vadd.f32 %v1280, 1.0
    %v1347 = vadd.f32 %v1282, 1.0
    %v1348 = vadd.f32 %v1284, 1.0
    %v1349 = vadd.f32 %v1286, 1.0
    %v1350 = vadd.f32 %v1288, 1.0
    %v1351 = vadd.f32 %v1290, 1.0
    %v1352 = vadd.f32 %v1292, 1.0
    %v1353 = vadd.f32 %v1294, 1.0
    %v1354 = vadd.f32 %v1296, 1.0
    %v1355 = vadd.f32 %v1298, 1.0
    %v1356 = vadd.f32 %v1300, 1.0
    %v1357 = vadd.f32 %v1302, 1.0
    %v1358 = vadd.f32 %v1304, 1.0
    %v1359 = vadd.f32 %v1306, 1.0
    %v1360 = vadd.f32 %v1308, 1.0
    %v1361 = vadd.f32 %v1310, 1.0
    %v1362 = vadd.f32 %v1312, 1.0
    %v1363 = vadd.f32 %v1314, 1.0
    %v1364 = vadd.f32 %v1316, 1.0
    %v1365 = vrcp.pop %v1317
    %v1366 = vmul.f32 1.0, %v1365
    %v1367 = vrcp.pop %v1318
    %v1368 = vmul.f32 1.0, %v1367
    %v1369 = vrcp.pop %v1319
    %v1370 = vmul.f32 1.0, %v1369
    %v1371 = vrcp.pop %v1320
    %v1372 = vmul.f32 1.0, %v1371
    %v1373 = vrcp.pop %v1321
    %v1374 = vmul.f32 1.0, %v1373
    %v1375 = vrcp.pop %v1322
    %v1376 = vmul.f32 1.0, %v1375
    %v1377 = vrcp.pop %v1323
    %v1378 = vmul.f32 1.0, %v1377
    %v1379 = vrcp.pop %v1324
    %v1380 = vmul.f32 1.0, %v1379
    %v1381 = vrcp.pop %v1325
    %v1382 = vmul.f32 1.0, %v1381
    %v1383 = vrcp.pop %v1326
    %v1384 = vmul.f32 1.0, %v1383
    %v1385 = vrcp.pop %v1327
    %v1386 = vmul.f32 1.0, %v1385
    %v1387 = vrcp.pop %v1328
    %v1388 = vmul.f32 1.0, %v1387
    %v1389 = vrcp.pop %v1329
    %v1390 = vmul.f32 1.0, %v1389
    %v1391 = vrcp.pop %v1330
    %v1392 = vmul.f32 1.0, %v1391
    %v1393 = vrcp.pop %v1331
    %v1394 = vmul.f32 1.0, %v1393
    %v1395 = vrcp.pop %v1332
    %v1396 = vmul.f32 1.0, %v1395
    %v1397 = vrcp.pop %v1333
    %v1398 = vmul.f32 1.0, %v1397
    %v1399 = vrcp.pop %v1334
    %v1400 = vmul.f32 1.0, %v1399
    %v1401 = vrcp.pop %v1335
    %v1402 = vmul.f32 1.0, %v1401
    %v1403 = vrcp.pop %v1336
    %v1404 = vmul.f32 1.0, %v1403
    %v1405 = vrcp.pop %v1337
    %v1406 = vmul.f32 1.0, %v1405
    %v1407 = vrcp.pop %v1338
    %v1408 = vmul.f32 1.0, %v1407
    %v1409 = vrcp.pop %v1339
    %v1410 = vmul.f32 1.0, %v1409
    %v1411 = vrcp.pop %v1340
    %v1412 = vmul.f32 1.0, %v1411
    %v1413 = vrcp.pop %v1341
    %v1414 = vmul.f32 1.0, %v1413
    %v1415 = vrcp.pop %v1342
    %v1416 = vmul.f32 1.0, %v1415
    %v1417 = vrcp.pop %v1343
    %v1418 = vmul.f32 1.0, %v1417
    %v1419 = vrcp.pop %v1344
    %v1420 = vmul.f32 1.0, %v1419
    %v1421 = vrcp.pop %v1345
    %v1422 = vmul.f32 1.0, %v1421
    %v1423 = vrcp.pop %v1346
    %v1424 = vmul.f32 1.0, %v1423
    %v1425 = vrcp.pop %v1347
    %v1426 = vmul.f32 1.0, %v1425
    %v1427 = vrcp.pop %v1348
    %v1428 = vmul.f32 1.0, %v1427
    %v1429 = vrcp.pop %v1349
    %v1430 = vmul.f32 1.0, %v1429
    %v1431 = vrcp.pop %v1350
    %v1432 = vmul.f32 1.0, %v1431
    %v1433 = vrcp.pop %v1351
    %v1434 = vmul.f32 1.0, %v1433
    %v1435 = vrcp.pop %v1352
    %v1436 = vmul.f32 1.0, %v1435
    %v1437 = vrcp.pop %v1353
    %v1438 = vmul.f32 1.0, %v1437
    %v1439 = vrcp.pop %v1354
    %v1440 = vmul.f32 1.0, %v1439
    %v1441 = vrcp.pop %v1355
    %v1442 = vmul.f32 1.0, %v1441
    %v1443 = vrcp.pop %v1356
    %v1444 = vmul.f32 1.0, %v1443
    %v1445 = vrcp.pop %v1357
    %v1446 = vmul.f32 1.0, %v1445
    %v1447 = vrcp.pop %v1358
    %v1448 = vmul.f32 1.0, %v1447
    %v1449 = vrcp.pop %v1359
    %v1450 = vmul.f32 1.0, %v1449
    %v1451 = vrcp.pop %v1360
    %v1452 = vmul.f32 1.0, %v1451
    %v1453 = vrcp.pop %v1361
    %v1454 = vmul.f32 1.0, %v1453
    %v1455 = vrcp.pop %v1362
    %v1456 = vmul.f32 1.0, %v1455
    %v1457 = vrcp.pop %v1363
    %v1458 = vmul.f32 1.0, %v1457
    %v1459 = vrcp.pop %v1364
    %v1460 = vmul.f32 1.0, %v1459
    %s1461 = scalar_lea.vmem [#allocation2], 384
    %1462 = vst [vmem:[%s1461] sm:$0xff] %v1366
    %1463 = vst [vmem:[%s1461 + $0x8] sm:$0xff] %v1368
    %1464 = vst [vmem:[%s1461 + $0x10] sm:$0xff] %v1370
    %1465 = vst [vmem:[%s1461 + $0x18] sm:$0xff] %v1372
    %1466 = vst [vmem:[%s1461 + $0x20] sm:$0xff] %v1374
    %1467 = vst.msk [vmem:[%s1461 + $0x28] sm:$0xff] %vm759, %v1376
    %1468 = vst [vmem:[%s1461 + $0x30] sm:$0xff] %v1378
    %1469 = vst [vmem:[%s1461 + $0x38] sm:$0xff] %v1380
    %1470 = vst [vmem:[%s1461 + $0x40] sm:$0xff] %v1382
    %1471 = vst [vmem:[%s1461 + $0x48] sm:$0xff] %v1384
    %1472 = vst [vmem:[%s1461 + $0x50] sm:$0xff] %v1386
    %1473 = vst.msk [vmem:[%s1461 + $0x58] sm:$0xff] %vm759, %v1388
    %1474 = vst [vmem:[%s1461 + $0x60] sm:$0xff] %v1390
    %1475 = vst [vmem:[%s1461 + $0x68] sm:$0xff] %v1392
    %1476 = vst [vmem:[%s1461 + $0x70] sm:$0xff] %v1394
    %1477 = vst [vmem:[%s1461 + $0x78] sm:$0xff] %v1396
    %1478 = vst [vmem:[%s1461 + $0x80] sm:$0xff] %v1398
    %1479 = vst.msk [vmem:[%s1461 + $0x88] sm:$0xff] %vm759, %v1400
    %1480 = vst [vmem:[%s1461 + $0x90] sm:$0xff] %v1402
    %1481 = vst [vmem:[%s1461 + $0x98] sm:$0xff] %v1404
    %1482 = vst [vmem:[%s1461 + $0xa0] sm:$0xff] %v1406
    %1483 = vst [vmem:[%s1461 + $0xa8] sm:$0xff] %v1408
    %1484 = vst [vmem:[%s1461 + $0xb0] sm:$0xff] %v1410
    %1485 = vst.msk [vmem:[%s1461 + $0xb8] sm:$0xff] %vm759, %v1412
    %1486 = vst [vmem:[%s1461 + $0xc0] sm:$0xff] %v1414
    %1487 = vst [vmem:[%s1461 + $0xc8] sm:$0xff] %v1416
    %1488 = vst [vmem:[%s1461 + $0xd0] sm:$0xff] %v1418
    %1489 = vst [vmem:[%s1461 + $0xd8] sm:$0xff] %v1420
    %1490 = vst [vmem:[%s1461 + $0xe0] sm:$0xff] %v1422
    %1491 = vst.msk [vmem:[%s1461 + $0xe8] sm:$0xff] %vm759, %v1424
    %1492 = vst [vmem:[%s1461 + $0xf0] sm:$0xff] %v1426
    %1493 = vst [vmem:[%s1461 + $0xf8] sm:$0xff] %v1428
    %1494 = vst [vmem:[%s1461 + $0x100] sm:$0xff] %v1430
    %1495 = vst [vmem:[%s1461 + $0x108] sm:$0xff] %v1432
    %1496 = vst [vmem:[%s1461 + $0x110] sm:$0xff] %v1434
    %1497 = vst.msk [vmem:[%s1461 + $0x118] sm:$0xff] %vm759, %v1436
    %1498 = vst [vmem:[%s1461 + $0x120] sm:$0xff] %v1438
    %1499 = vst [vmem:[%s1461 + $0x128] sm:$0xff] %v1440
    %1500 = vst [vmem:[%s1461 + $0x130] sm:$0xff] %v1442
    %1501 = vst [vmem:[%s1461 + $0x138] sm:$0xff] %v1444
    %1502 = vst [vmem:[%s1461 + $0x140] sm:$0xff] %v1446
    %1503 = vst.msk [vmem:[%s1461 + $0x148] sm:$0xff] %vm759, %v1448
    %1504 = vst [vmem:[%s1461 + $0x150] sm:$0xff] %v1450
    %1505 = vst [vmem:[%s1461 + $0x158] sm:$0xff] %v1452
    %1506 = vst [vmem:[%s1461 + $0x160] sm:$0xff] %v1454
    %1507 = vst [vmem:[%s1461 + $0x168] sm:$0xff] %v1456
    %1508 = vst [vmem:[%s1461 + $0x170] sm:$0xff] %v1458
    %1509 = vst.msk [vmem:[%s1461 + $0x178] sm:$0xff] %vm759, %v1460
    // Predicated region
    $region14: #{tpu_custom_call.1} parent=1 // pred_check
      _
    $region15: #{tpu_custom_call.1} parent=1 // pred_check_branch
      %1511 = sbr.rel (0) target = $region17
    $region16: #{tpu_custom_call.1} parent=1 // pred_region
      %s1513 = ssub.s32 12288, 12288
      %1514 = vsyncadd [#allocation3], %s1513
      %s1515 = sshll.u32 [#allocation2], 4
      %s1516 = int_to_ptr.vmem [resolvable:$true] %s1515
      %1521 = dma.vmem_to_hbm [thread:$0]  %s1516, 12288, %s3, [#allocation3], 768, 768, 48
    $region17: #{tpu_custom_call.1} parent=1 // pred_fallthru
      _
    // Predicated region
    $region18: #{tpu_custom_call.1} parent=1 // pred_check
      _
    $region19: #{tpu_custom_call.1} parent=1 // pred_check_branch
      %1523 = sbr.rel (0) target = $region21
    $region20: #{tpu_custom_call.1} parent=1 // pred_region
      %1524 = dma.done [#allocation3], 12288
    $region21: #{tpu_custom_call.1} parent=1 // pred_fallthru
      _
    %1525 = vsyncpa [#allocation3], 1

</llo_original>
